<compile_context>
chip_gen: v5e
topology: v5e:2x2
jax: 0.10.0
libtpu: 0.0.40
codegen_flags: <defaults>
</compile_context>

<pallas_src>
import functools

import jax
import jax.numpy as jnp
import numpy as np
from jax import lax
from jax.experimental import pallas as pl
from jax.experimental.pallas import tpu as pltpu

# ----------------------------- configuration -------------------------------
V_SIZE = 32          # must equal OUTPUT_SIZE (residual v + v_update)
Q_SIZE = 32          # must equal OUTPUT_SIZE (residual q + q_update)
OUTPUT_SIZE = 32
NUM_HEAD = 4
BATCH = 2
NUM_OBJ = 16
MAX_LEN = 8


# ------------------------------ Pallas kernel -------------------------------
def dy_intra_kernel(v_ref, q_ref, vm_ref, qm_ref, vb_ref, qb_ref,
                    wv4q_ref, bv4q_ref, wq4v_ref, bq4v_ref,
                    wv_ref, bv_ref, wq_ref, bq_ref,
                    wvo_ref, bvo_ref, wqo_ref, bqo_ref,
                    out_v_ref, out_q_ref, *, H, DH, D):
    """Fully fused DyIntraModalityUpdate for one batch element.

    v_ref   : [1, N, Vs]        q_ref   : [1, L, Qs]
    vm_ref  : [1, N, 1]         qm_ref  : [1, L, 1]      (0/1 masks)
    vb_ref  : [1, 1, N]         qb_ref  : [1, 1, L]      (additive bias 0/-1e9)
    wv4q_ref: [Vs, D]  bv4q_ref: [1, D]                  (v->q gate)
    wq4v_ref: [Qs, D]  bq4v_ref: [1, D]                  (q->v gate)
    wv_ref  : [Vs, 3D] bv_ref  : [1, 3D]                 (fused k|q|v proj)
    wq_ref  : [Qs, 3D] bq_ref  : [1, 3D]
    wvo_ref : [D, D]   bvo_ref : [1, D]
    wqo_ref : [D, D]   bqo_ref : [1, D]
    out_v_ref: [1, N, D]        out_q_ref: [1, L, D]
    """
    f32 = jnp.float32
    v = v_ref[0]          # [N, Vs]
    q = q_ref[0]          # [L, Qs]
    vm = vm_ref[0]        # [N, 1]
    qm = qm_ref[0]        # [L, 1]
    v_bias = vb_ref[0]    # [1, N]
    q_bias = qb_ref[0]    # [1, L]

    inv_scale = 1.0 / (float(DH) ** 0.5)

    # ---- masked means over the sequence axis ----
    v_mean = jnp.sum(v * vm, axis=0, keepdims=True) / jnp.sum(vm)   # [1, Vs]
    q_mean = jnp.sum(q * qm, axis=0, keepdims=True) / jnp.sum(qm)   # [1, Qs]

    # ---- dynamic sigmoid gates (full-width, one MXU pass each) ----
    v4q_gate = jax.nn.sigmoid(
        jnp.dot(jnp.maximum(v_mean, 0.0), wv4q_ref[...],
                preferred_element_type=f32) + bv4q_ref[...])        # [1, D]
    q4v_gate = jax.nn.sigmoid(
        jnp.dot(jnp.maximum(q_mean, 0.0), wq4v_ref[...],
                preferred_element_type=f32) + bq4v_ref[...])        # [1, D]
    g_v = 1.0 + q4v_gate      # gates visual keys / queries
    g_q = 1.0 + v4q_gate      # gates question keys / queries

    # ---- fused k|q|v projections (one MXU pass per modality) ----
    v_trans = (jnp.dot(jnp.maximum(v, 0.0), wv_ref[...],
                       preferred_element_type=f32) + bv_ref[...]) * vm   # [N, 3D]
    q_trans = (jnp.dot(jnp.maximum(q, 0.0), wq_ref[...],
                       preferred_element_type=f32) + bq_ref[...]) * qm   # [L, 3D]

    v_k, v_qr, v_v = v_trans[:, 0:D], v_trans[:, D:2 * D], v_trans[:, 2 * D:3 * D]
    q_k, q_qr, q_v = q_trans[:, 0:D], q_trans[:, D:2 * D], q_trans[:, 2 * D:3 * D]

    # gating happens before the head split (full-width, exactly as in PyTorch)
    new_vq = g_v * v_qr
    new_vk = g_v * v_k
    new_qq = g_q * q_qr
    new_qk = g_q * q_k

    wvo = wvo_ref[...]    # [D, D]
    wqo = wqo_ref[...]    # [D, D]

    dn_qkT = (((1,), (1,)), ((), ()))   # contract last dims of both: A @ B.T

    def head_attn(qh, kh, vv, bias):
        s = (lax.dot_general(qh, kh, dn_qkT,
                             preferred_element_type=f32) + bias) * inv_scale
        s = s - jnp.max(s, axis=-1, keepdims=True)
        e = jnp.exp(s)
        p = e * pl.reciprocal(jnp.sum(e, axis=-1, keepdims=True), approx=False)
        return jnp.dot(p, vv, preferred_element_type=f32)

    # ---- output projection: (x + x_update) @ W_o + b, concat-free ----
    #   (x + sum_h pad(upd_h)) @ W = x @ W + sum_h upd_h @ W[h*dh:(h+1)*dh, :]
    v_out = jnp.dot(v, wvo, preferred_element_type=f32) + bvo_ref[...]
    q_out = jnp.dot(q, wqo, preferred_element_type=f32) + bqo_ref[...]
    for h in range(H):
        lo, hi = h * DH, (h + 1) * DH
        v_upd_h = head_attn(new_vq[:, lo:hi], new_vk[:, lo:hi],
                            v_v[:, lo:hi], v_bias)                 # [N, dh]
        q_upd_h = head_attn(new_qq[:, lo:hi], new_qk[:, lo:hi],
                            q_v[:, lo:hi], q_bias)                 # [L, dh]
        v_out = v_out + jnp.dot(v_upd_h, wvo[lo:hi, :], preferred_element_type=f32)
        q_out = q_out + jnp.dot(q_upd_h, wqo[lo:hi, :], preferred_element_type=f32)

    out_v_ref[0] = v_out
    out_q_ref[0] = q_out


# ------------------------------ Pallas wrapper -------------------------------
def dy_intra_modality_update(v, q, v_mask, q_mask, params,
                             D=OUTPUT_SIZE, H=NUM_HEAD):
    B, N, Vs = v.shape
    _, L, Qs = q.shape
    dh = D // H

    # per-batch mask layouts + additive score bias (computed once, outside)
    vm_col = v_mask.reshape(B, N, 1)
    qm_col = q_mask.reshape(B, L, 1)
    v_bias = ((v_mask - 1.0) * 1e9).reshape(B, 1, N)
    q_bias = ((q_mask - 1.0) * 1e9).reshape(B, 1, L)

    # biases as [1, out] 2-D slabs for in-kernel broadcast
    bv4q = params["bv4q"].reshape(1, D)
    bq4v = params["bq4v"].reshape(1, D)
    bv = params["bv"].reshape(1, 3 * D)
    bq = params["bq"].reshape(1, 3 * D)
    bvo = params["bvo"].reshape(1, D)
    bqo = params["bqo"].reshape(1, D)

    kernel = functools.partial(dy_intra_kernel, H=H, DH=dh, D=D)

    def full(arr):  # whole-array block, resident across the batch grid
        nd = arr.ndim
        return pl.BlockSpec(arr.shape, lambda b, _nd=nd: (0,) * _nd)

    out_v, out_q = pl.pallas_call(
        kernel,
        out_shape=(
            jax.ShapeDtypeStruct((B, N, D), jnp.float32),
            jax.ShapeDtypeStruct((B, L, D), jnp.float32),
        ),
        grid=(B,),
        in_specs=[
            pl.BlockSpec((1, N, Vs), lambda b: (b, 0, 0)),
            pl.BlockSpec((1, L, Qs), lambda b: (b, 0, 0)),
            pl.BlockSpec((1, N, 1), lambda b: (b, 0, 0)),
            pl.BlockSpec((1, L, 1), lambda b: (b, 0, 0)),
            pl.BlockSpec((1, 1, N), lambda b: (b, 0, 0)),
            pl.BlockSpec((1, 1, L), lambda b: (b, 0, 0)),
            full(params["Wv4q"]), full(bv4q),
            full(params["Wq4v"]), full(bq4v),
            full(params["Wv"]), full(bv),
            full(params["Wq"]), full(bq),
            full(params["Wvo"]), full(bvo),
            full(params["Wqo"]), full(bqo),
        ],
        out_specs=(
            pl.BlockSpec((1, N, D), lambda b: (b, 0, 0)),
            pl.BlockSpec((1, L, D), lambda b: (b, 0, 0)),
        ),
        compiler_params=pltpu.CompilerParams(dimension_semantics=("parallel",)),
    )(v, q, vm_col, qm_col, v_bias, q_bias,
      params["Wv4q"], bv4q, params["Wq4v"], bq4v,
      params["Wv"], bv, params["Wq"], bq,
      params["Wvo"], bvo, params["Wqo"], bqo)
    return out_v, out_q


# ---------------------------- pure-JAX reference -----------------------------
def reference(v, q, v_mask, q_mask, p, D=OUTPUT_SIZE, H=NUM_HEAD):
    dh = D // H
    scale = float(dh) ** 0.5
    v_mean = (v * v_mask[..., None]).sum(1) / v_mask.sum(1, keepdims=True)
    q_mean = (q * q_mask[..., None]).sum(1) / q_mask.sum(1, keepdims=True)
    v4q_gate = jax.nn.sigmoid(jnp.maximum(v_mean, 0.0) @ p["Wv4q"] + p["bv4q"])[:, None, :]
    q4v_gate = jax.nn.sigmoid(jnp.maximum(q_mean, 0.0) @ p["Wq4v"] + p["bq4v"])[:, None, :]
    v_trans = (jnp.maximum(v, 0.0) @ p["Wv"] + p["bv"]) * v_mask[..., None]
    q_trans = (jnp.maximum(q, 0.0) @ p["Wq"] + p["bq"]) * q_mask[..., None]
    v_k, v_q_, v_v = jnp.split(v_trans, 3, axis=2)
    q_k, q_q_, q_v = jnp.split(q_trans, 3, axis=2)
    new_vq = (1.0 + q4v_gate) * v_q_
    new_vk = (1.0 + q4v_gate) * v_k
    new_qq = (1.0 + v4q_gate) * q_q_
    new_qk = (1.0 + v4q_gate) * q_k
    v_upds, q_upds = [], []
    for i in range(H):
        sl = slice(i * dh, (i + 1) * dh)
        v2v = jnp.einsum("bnd,bmd->bnm", new_vq[..., sl], new_vk[..., sl])
        v2v = jnp.where(v_mask[:, None, :] == 0, -1e9, v2v) / scale
        q2q = jnp.einsum("bld,bmd->blm", new_qq[..., sl], new_qk[..., sl])
        q2q = jnp.where(q_mask[:, None, :] == 0, -1e9, q2q) / scale
        v_upds.append(jnp.einsum("bnm,bmd->bnd", jax.nn.softmax(v2v, -1), v_v[..., sl]))
        q_upds.append(jnp.einsum("blm,bmd->bld", jax.nn.softmax(q2q, -1), q_v[..., sl]))
    v_update = jnp.concatenate(v_upds, axis=-1)
    q_update = jnp.concatenate(q_upds, axis=-1)
    updated_v = (v + v_update) @ p["Wvo"] + p["bvo"]
    updated_q = (q + q_update) @ p["Wqo"] + p["bqo"]
    return updated_v, updated_q


# ---------------------------------- main -------------------------------------
def init_linear(key, fan_in, fan_out):
    kw, kb = jax.random.split(key)
    bound = 1.0 / np.sqrt(fan_in)
    w = jax.random.uniform(kw, (fan_in, fan_out), jnp.float32, -bound, bound)
    b = jax.random.uniform(kb, (fan_out,), jnp.float32, -bound, bound)
    return w, b


if __name__ == "__main__":
    key = jax.random.PRNGKey(0)
    k_v, k_q, k1, k2, k3, k4, k5, k6 = jax.random.split(key, 8)

    v = jax.random.normal(k_v, (BATCH, NUM_OBJ, V_SIZE), jnp.float32)
    q = jax.random.normal(k_q, (BATCH, MAX_LEN, Q_SIZE), jnp.float32)

    # masks: 1 for valid positions, 0 for padding
    v_valid = jnp.array([12, 10])
    q_valid = jnp.array([6, 8])
    v_mask = (jnp.arange(NUM_OBJ)[None, :] < v_valid[:, None]).astype(jnp.float32)
    q_mask = (jnp.arange(MAX_LEN)[None, :] < q_valid[:, None]).astype(jnp.float32)

    Wv4q, bv4q = init_linear(k1, V_SIZE, OUTPUT_SIZE)        # v4q_gate_lin
    Wq4v, bq4v = init_linear(k2, Q_SIZE, OUTPUT_SIZE)        # q4v_gate_lin
    Wv, bv = init_linear(k3, V_SIZE, OUTPUT_SIZE * 3)        # v_lin
    Wq, bq = init_linear(k4, Q_SIZE, OUTPUT_SIZE * 3)        # q_lin
    Wvo, bvo = init_linear(k5, OUTPUT_SIZE, OUTPUT_SIZE)     # v_output
    Wqo, bqo = init_linear(k6, OUTPUT_SIZE, OUTPUT_SIZE)     # q_output
    params = dict(Wv4q=Wv4q, bv4q=bv4q, Wq4v=Wq4v, bq4v=bq4v,
                  Wv=Wv, bv=bv, Wq=Wq, bq=bq,
                  Wvo=Wvo, bvo=bvo, Wqo=Wqo, bqo=bqo)

    out_v, out_q = dy_intra_modality_update(v, q, v_mask, q_mask, params)
    jax.block_until_ready((out_v, out_q))

    ref_v, ref_q = reference(v, q, v_mask, q_mask, params)
    np.testing.assert_allclose(np.asarray(out_v), np.asarray(ref_v), rtol=5e-4, atol=5e-4)
    np.testing.assert_allclose(np.asarray(out_q), np.asarray(ref_q), rtol=5e-4, atol=5e-4)

    print("KERNEL_OK")
</pallas_src>

<mosaic_0001>
module attributes {stable_mosaic.version = 11 : i64} {
  func.func @dy_intra_kernel(%arg0: i32, %arg1: memref<1x16x32xf32, #tpu.memory_space<vmem>>, %arg2: memref<1x8x32xf32, #tpu.memory_space<vmem>>, %arg3: memref<1x16x1xf32, #tpu.memory_space<vmem>>, %arg4: memref<1x8x1xf32, #tpu.memory_space<vmem>>, %arg5: memref<1x1x16xf32, #tpu.memory_space<vmem>>, %arg6: memref<1x1x8xf32, #tpu.memory_space<vmem>>, %arg7: memref<32x32xf32, #tpu.memory_space<vmem>>, %arg8: memref<1x32xf32, #tpu.memory_space<vmem>>, %arg9: memref<32x32xf32, #tpu.memory_space<vmem>>, %arg10: memref<1x32xf32, #tpu.memory_space<vmem>>, %arg11: memref<32x96xf32, #tpu.memory_space<vmem>>, %arg12: memref<1x96xf32, #tpu.memory_space<vmem>>, %arg13: memref<32x96xf32, #tpu.memory_space<vmem>>, %arg14: memref<1x96xf32, #tpu.memory_space<vmem>>, %arg15: memref<32x32xf32, #tpu.memory_space<vmem>>, %arg16: memref<1x32xf32, #tpu.memory_space<vmem>>, %arg17: memref<32x32xf32, #tpu.memory_space<vmem>>, %arg18: memref<1x32xf32, #tpu.memory_space<vmem>>, %arg19: memref<1x16x32xf32, #tpu.memory_space<vmem>>, %arg20: memref<1x8x32xf32, #tpu.memory_space<vmem>>) attributes {dimension_semantics = [#tpu.dimension_semantics<parallel>], iteration_bounds = array<i64: 2>, scalar_prefetch = 0 : i64, scratch_operands = 0 : i64, tpu.core_type = #tpu.core_type<tc>, window_params = [{transform_indices = @transform_0, window_bounds = array<i64: 1, 16, 32>}, {transform_indices = @transform_1, window_bounds = array<i64: 1, 8, 32>}, {transform_indices = @transform_2, window_bounds = array<i64: 1, 16, 1>}, {transform_indices = @transform_3, window_bounds = array<i64: 1, 8, 1>}, {transform_indices = @transform_4, window_bounds = array<i64: 1, 1, 16>}, {transform_indices = @transform_5, window_bounds = array<i64: 1, 1, 8>}, {pipeline_mode = #tpu.pipeline_mode<synchronous>, transform_indices = @transform_6, window_bounds = array<i64: 32, 32>}, {pipeline_mode = #tpu.pipeline_mode<synchronous>, transform_indices = @transform_7, window_bounds = array<i64: 1, 32>}, {pipeline_mode = #tpu.pipeline_mode<synchronous>, transform_indices = @transform_8, window_bounds = array<i64: 32, 32>}, {pipeline_mode = #tpu.pipeline_mode<synchronous>, transform_indices = @transform_9, window_bounds = array<i64: 1, 32>}, {pipeline_mode = #tpu.pipeline_mode<synchronous>, transform_indices = @transform_10, window_bounds = array<i64: 32, 96>}, {pipeline_mode = #tpu.pipeline_mode<synchronous>, transform_indices = @transform_11, window_bounds = array<i64: 1, 96>}, {pipeline_mode = #tpu.pipeline_mode<synchronous>, transform_indices = @transform_12, window_bounds = array<i64: 32, 96>}, {pipeline_mode = #tpu.pipeline_mode<synchronous>, transform_indices = @transform_13, window_bounds = array<i64: 1, 96>}, {pipeline_mode = #tpu.pipeline_mode<synchronous>, transform_indices = @transform_14, window_bounds = array<i64: 32, 32>}, {pipeline_mode = #tpu.pipeline_mode<synchronous>, transform_indices = @transform_15, window_bounds = array<i64: 1, 32>}, {pipeline_mode = #tpu.pipeline_mode<synchronous>, transform_indices = @transform_16, window_bounds = array<i64: 32, 32>}, {pipeline_mode = #tpu.pipeline_mode<synchronous>, transform_indices = @transform_17, window_bounds = array<i64: 1, 32>}, {transform_indices = @transform_18, window_bounds = array<i64: 1, 16, 32>}, {transform_indices = @transform_19, window_bounds = array<i64: 1, 8, 32>}]} {
    %c0 = arith.constant 0 : index
    %c0_0 = arith.constant 0 : index
    %c0_1 = arith.constant 0 : index
    %0 = vector.load %arg1[%c0, %c0_0, %c0_1] : memref<1x16x32xf32, #tpu.memory_space<vmem>>, vector<1x16x32xf32>
    %1 = vector.shape_cast %0 : vector<1x16x32xf32> to vector<16x32xf32>
    %c0_2 = arith.constant 0 : index
    %c0_3 = arith.constant 0 : index
    %c0_4 = arith.constant 0 : index
    %2 = vector.load %arg2[%c0_2, %c0_3, %c0_4] : memref<1x8x32xf32, #tpu.memory_space<vmem>>, vector<1x8x32xf32>
    %3 = vector.shape_cast %2 : vector<1x8x32xf32> to vector<8x32xf32>
    %c0_5 = arith.constant 0 : index
    %c0_6 = arith.constant 0 : index
    %c0_7 = arith.constant 0 : index
    %4 = vector.load %arg3[%c0_5, %c0_6, %c0_7] : memref<1x16x1xf32, #tpu.memory_space<vmem>>, vector<1x16x1xf32>
    %5 = vector.shape_cast %4 : vector<1x16x1xf32> to vector<16x1xf32>
    %c0_8 = arith.constant 0 : index
    %c0_9 = arith.constant 0 : index
    %c0_10 = arith.constant 0 : index
    %6 = vector.load %arg4[%c0_8, %c0_9, %c0_10] : memref<1x8x1xf32, #tpu.memory_space<vmem>>, vector<1x8x1xf32>
    %7 = vector.shape_cast %6 : vector<1x8x1xf32> to vector<8x1xf32>
    %c0_11 = arith.constant 0 : index
    %c0_12 = arith.constant 0 : index
    %c0_13 = arith.constant 0 : index
    %8 = vector.load %arg5[%c0_11, %c0_12, %c0_13] : memref<1x1x16xf32, #tpu.memory_space<vmem>>, vector<1x1x16xf32>
    %9 = vector.shape_cast %8 : vector<1x1x16xf32> to vector<1x16xf32>
    %c0_14 = arith.constant 0 : index
    %c0_15 = arith.constant 0 : index
    %c0_16 = arith.constant 0 : index
    %10 = vector.load %arg6[%c0_14, %c0_15, %c0_16] : memref<1x1x8xf32, #tpu.memory_space<vmem>>, vector<1x1x8xf32>
    %11 = vector.shape_cast %10 : vector<1x1x8xf32> to vector<1x8xf32>
    %12 = vector.broadcast %5 : vector<16x1xf32> to vector<16x32xf32>
    %13 = arith.mulf %1, %12 : vector<16x32xf32>
    %cst = arith.constant dense<0.000000e+00> : vector<32xf32>
    %14 = vector.multi_reduction <add>, %13, %cst [0] : vector<16x32xf32> to vector<32xf32>
    %15 = vector.shape_cast %14 : vector<32xf32> to vector<1x32xf32>
    %16 = vector.shape_cast %5 : vector<16x1xf32> to vector<1x16x1xf32>
    %cst_17 = arith.constant dense<0.000000e+00> : vector<1xf32>
    %17 = vector.multi_reduction <add>, %16, %cst_17 [1, 2] : vector<1x16x1xf32> to vector<1xf32>
    %18 = vector.shape_cast %17 : vector<1xf32> to vector<1x1x1xf32>
    %19 = vector.extract %18[0, 0, 0] : f32 from vector<1x1x1xf32>
    %20 = vector.broadcast %19 : f32 to vector<1x32xf32>
    %21 = arith.divf %15, %20 : vector<1x32xf32>
    %22 = vector.broadcast %7 : vector<8x1xf32> to vector<8x32xf32>
    %23 = arith.mulf %3, %22 : vector<8x32xf32>
    %cst_18 = arith.constant dense<0.000000e+00> : vector<32xf32>
    %24 = vector.multi_reduction <add>, %23, %cst_18 [0] : vector<8x32xf32> to vector<32xf32>
    %25 = vector.shape_cast %24 : vector<32xf32> to vector<1x32xf32>
    %26 = vector.shape_cast %7 : vector<8x1xf32> to vector<1x8x1xf32>
    %cst_19 = arith.constant dense<0.000000e+00> : vector<1xf32>
    %27 = vector.multi_reduction <add>, %26, %cst_19 [1, 2] : vector<1x8x1xf32> to vector<1xf32>
    %28 = vector.shape_cast %27 : vector<1xf32> to vector<1x1x1xf32>
    %29 = vector.extract %28[0, 0, 0] : f32 from vector<1x1x1xf32>
    %30 = vector.broadcast %29 : f32 to vector<1x32xf32>
    %31 = arith.divf %25, %30 : vector<1x32xf32>
    %cst_20 = arith.constant 0.000000e+00 : f32
    %32 = vector.broadcast %cst_20 : f32 to vector<1x32xf32>
    %33 = arith.maximumf %21, %32 : vector<1x32xf32>
    %c0_21 = arith.constant 0 : index
    %c0_22 = arith.constant 0 : index
    %34 = vector.load %arg7[%c0_21, %c0_22] : memref<32x32xf32, #tpu.memory_space<vmem>>, vector<32x32xf32>
    %cst_23 = arith.constant dense<0.000000e+00> : vector<1x32xf32>
    %35 = tpu.matmul %33, %34, %cst_23 {dimension_numbers = #tpu.dot_dimension_numbers<[1], [0], [0], [1], [0, 0, 1, 1], [], []>} : vector<1x32xf32>, vector<32x32xf32>, vector<1x32xf32> -> vector<1x32xf32>
    %c0_24 = arith.constant 0 : index
    %c0_25 = arith.constant 0 : index
    %36 = vector.load %arg8[%c0_24, %c0_25] : memref<1x32xf32, #tpu.memory_space<vmem>>, vector<1x32xf32>
    %37 = arith.addf %35, %36 : vector<1x32xf32>
    %38 = arith.negf %37 : vector<1x32xf32>
    %39 = math.exp %38 : vector<1x32xf32>
    %cst_26 = arith.constant 1.000000e+00 : f32
    %40 = vector.broadcast %cst_26 : f32 to vector<1x32xf32>
    %41 = arith.addf %40, %39 : vector<1x32xf32>
    %42 = arith.divf %40, %41 : vector<1x32xf32>
    %cst_27 = arith.constant 0.000000e+00 : f32
    %43 = vector.broadcast %cst_27 : f32 to vector<1x32xf32>
    %44 = arith.maximumf %31, %43 : vector<1x32xf32>
    %c0_28 = arith.constant 0 : index
    %c0_29 = arith.constant 0 : index
    %45 = vector.load %arg9[%c0_28, %c0_29] : memref<32x32xf32, #tpu.memory_space<vmem>>, vector<32x32xf32>
    %cst_30 = arith.constant dense<0.000000e+00> : vector<1x32xf32>
    %46 = tpu.matmul %44, %45, %cst_30 {dimension_numbers = #tpu.dot_dimension_numbers<[1], [0], [0], [1], [0, 0, 1, 1], [], []>} : vector<1x32xf32>, vector<32x32xf32>, vector<1x32xf32> -> vector<1x32xf32>
    %c0_31 = arith.constant 0 : index
    %c0_32 = arith.constant 0 : index
    %47 = vector.load %arg10[%c0_31, %c0_32] : memref<1x32xf32, #tpu.memory_space<vmem>>, vector<1x32xf32>
    %48 = arith.addf %46, %47 : vector<1x32xf32>
    %49 = arith.negf %48 : vector<1x32xf32>
    %50 = math.exp %49 : vector<1x32xf32>
    %cst_33 = arith.constant 1.000000e+00 : f32
    %51 = vector.broadcast %cst_33 : f32 to vector<1x32xf32>
    %52 = arith.addf %51, %50 : vector<1x32xf32>
    %53 = arith.divf %51, %52 : vector<1x32xf32>
    %cst_34 = arith.constant 1.000000e+00 : f32
    %54 = vector.broadcast %cst_34 : f32 to vector<1x32xf32>
    %55 = arith.addf %54, %53 : vector<1x32xf32>
    %cst_35 = arith.constant 1.000000e+00 : f32
    %56 = vector.broadcast %cst_35 : f32 to vector<1x32xf32>
    %57 = arith.addf %56, %42 : vector<1x32xf32>
    %cst_36 = arith.constant 0.000000e+00 : f32
    %58 = vector.broadcast %cst_36 : f32 to vector<16x32xf32>
    %59 = arith.maximumf %1, %58 : vector<16x32xf32>
    %c0_37 = arith.constant 0 : index
    %c0_38 = arith.constant 0 : index
    %60 = vector.load %arg11[%c0_37, %c0_38] : memref<32x96xf32, #tpu.memory_space<vmem>>, vector<32x96xf32>
    %cst_39 = arith.constant dense<0.000000e+00> : vector<16x96xf32>
    %61 = tpu.matmul %59, %60, %cst_39 {dimension_numbers = #tpu.dot_dimension_numbers<[1], [0], [0], [1], [0, 0, 1, 1], [], []>} : vector<16x32xf32>, vector<32x96xf32>, vector<16x96xf32> -> vector<16x96xf32>
    %c0_40 = arith.constant 0 : index
    %c0_41 = arith.constant 0 : index
    %62 = vector.load %arg12[%c0_40, %c0_41] : memref<1x96xf32, #tpu.memory_space<vmem>>, vector<1x96xf32>
    %63 = vector.broadcast %62 : vector<1x96xf32> to vector<16x96xf32>
    %64 = arith.addf %61, %63 : vector<16x96xf32>
    %65 = vector.broadcast %5 : vector<16x1xf32> to vector<16x96xf32>
    %66 = arith.mulf %64, %65 : vector<16x96xf32>
    %cst_42 = arith.constant 0.000000e+00 : f32
    %67 = vector.broadcast %cst_42 : f32 to vector<8x32xf32>
    %68 = arith.maximumf %3, %67 : vector<8x32xf32>
    %c0_43 = arith.constant 0 : index
    %c0_44 = arith.constant 0 : index
    %69 = vector.load %arg13[%c0_43, %c0_44] : memref<32x96xf32, #tpu.memory_space<vmem>>, vector<32x96xf32>
    %cst_45 = arith.constant dense<0.000000e+00> : vector<8x96xf32>
    %70 = tpu.matmul %68, %69, %cst_45 {dimension_numbers = #tpu.dot_dimension_numbers<[1], [0], [0], [1], [0, 0, 1, 1], [], []>} : vector<8x32xf32>, vector<32x96xf32>, vector<8x96xf32> -> vector<8x96xf32>
    %c0_46 = arith.constant 0 : index
    %c0_47 = arith.constant 0 : index
    %71 = vector.load %arg14[%c0_46, %c0_47] : memref<1x96xf32, #tpu.memory_space<vmem>>, vector<1x96xf32>
    %72 = vector.broadcast %71 : vector<1x96xf32> to vector<8x96xf32>
    %73 = arith.addf %70, %72 : vector<8x96xf32>
    %74 = vector.broadcast %7 : vector<8x1xf32> to vector<8x96xf32>
    %75 = arith.mulf %73, %74 : vector<8x96xf32>
    %76 = vector.extract_strided_slice %66 {offsets = [0, 0], sizes = [16, 32], strides = [1, 1]} : vector<16x96xf32> to vector<16x32xf32>
    %77 = vector.extract_strided_slice %66 {offsets = [0, 32], sizes = [16, 32], strides = [1, 1]} : vector<16x96xf32> to vector<16x32xf32>
    %78 = vector.extract_strided_slice %66 {offsets = [0, 64], sizes = [16, 32], strides = [1, 1]} : vector<16x96xf32> to vector<16x32xf32>
    %79 = vector.extract_strided_slice %75 {offsets = [0, 0], sizes = [8, 32], strides = [1, 1]} : vector<8x96xf32> to vector<8x32xf32>
    %80 = vector.extract_strided_slice %75 {offsets = [0, 32], sizes = [8, 32], strides = [1, 1]} : vector<8x96xf32> to vector<8x32xf32>
    %81 = vector.extract_strided_slice %75 {offsets = [0, 64], sizes = [8, 32], strides = [1, 1]} : vector<8x96xf32> to vector<8x32xf32>
    %82 = vector.broadcast %55 : vector<1x32xf32> to vector<16x32xf32>
    %83 = arith.mulf %82, %77 : vector<16x32xf32>
    %84 = vector.broadcast %55 : vector<1x32xf32> to vector<16x32xf32>
    %85 = arith.mulf %84, %76 : vector<16x32xf32>
    %86 = vector.broadcast %57 : vector<1x32xf32> to vector<8x32xf32>
    %87 = arith.mulf %86, %80 : vector<8x32xf32>
    %88 = vector.broadcast %57 : vector<1x32xf32> to vector<8x32xf32>
    %89 = arith.mulf %88, %79 : vector<8x32xf32>
    %c0_48 = arith.constant 0 : index
    %c0_49 = arith.constant 0 : index
    %90 = vector.load %arg15[%c0_48, %c0_49] : memref<32x32xf32, #tpu.memory_space<vmem>>, vector<32x32xf32>
    %c0_50 = arith.constant 0 : index
    %c0_51 = arith.constant 0 : index
    %91 = vector.load %arg17[%c0_50, %c0_51] : memref<32x32xf32, #tpu.memory_space<vmem>>, vector<32x32xf32>
    %cst_52 = arith.constant dense<0.000000e+00> : vector<16x32xf32>
    %92 = tpu.matmul %1, %90, %cst_52 {dimension_numbers = #tpu.dot_dimension_numbers<[1], [0], [0], [1], [0, 0, 1, 1], [], []>} : vector<16x32xf32>, vector<32x32xf32>, vector<16x32xf32> -> vector<16x32xf32>
    %c0_53 = arith.constant 0 : index
    %c0_54 = arith.constant 0 : index
    %93 = vector.load %arg16[%c0_53, %c0_54] : memref<1x32xf32, #tpu.memory_space<vmem>>, vector<1x32xf32>
    %94 = vector.broadcast %93 : vector<1x32xf32> to vector<16x32xf32>
    %95 = arith.addf %92, %94 : vector<16x32xf32>
    %cst_55 = arith.constant dense<0.000000e+00> : vector<8x32xf32>
    %96 = tpu.matmul %3, %91, %cst_55 {dimension_numbers = #tpu.dot_dimension_numbers<[1], [0], [0], [1], [0, 0, 1, 1], [], []>} : vector<8x32xf32>, vector<32x32xf32>, vector<8x32xf32> -> vector<8x32xf32>
    %c0_56 = arith.constant 0 : index
    %c0_57 = arith.constant 0 : index
    %97 = vector.load %arg18[%c0_56, %c0_57] : memref<1x32xf32, #tpu.memory_space<vmem>>, vector<1x32xf32>
    %98 = vector.broadcast %97 : vector<1x32xf32> to vector<8x32xf32>
    %99 = arith.addf %96, %98 : vector<8x32xf32>
    %100 = vector.extract_strided_slice %83 {offsets = [0, 0], sizes = [16, 8], strides = [1, 1]} : vector<16x32xf32> to vector<16x8xf32>
    %101 = vector.extract_strided_slice %85 {offsets = [0, 0], sizes = [16, 8], strides = [1, 1]} : vector<16x32xf32> to vector<16x8xf32>
    %102 = vector.extract_strided_slice %78 {offsets = [0, 0], sizes = [16, 8], strides = [1, 1]} : vector<16x32xf32> to vector<16x8xf32>
    %cst_58 = arith.constant dense<0.000000e+00> : vector<16x16xf32>
    %103 = tpu.matmul %100, %101, %cst_58 {dimension_numbers = #tpu.dot_dimension_numbers<[1], [1], [0], [0], [0, 0, 1, 0], [], []>} : vector<16x8xf32>, vector<16x8xf32>, vector<16x16xf32> -> vector<16x16xf32>
    %104 = vector.broadcast %9 : vector<1x16xf32> to vector<16x16xf32>
    %105 = arith.addf %103, %104 : vector<16x16xf32>
    %cst_59 = arith.constant 0.353553385 : f32
    %106 = vector.broadcast %cst_59 : f32 to vector<16x16xf32>
    %107 = arith.mulf %105, %106 : vector<16x16xf32>
    %cst_60 = arith.constant dense<0xFF800000> : vector<16xf32>
    %108 = vector.multi_reduction <maximumf>, %107, %cst_60 [1] : vector<16x16xf32> to vector<16xf32>
    %109 = vector.shape_cast %108 : vector<16xf32> to vector<16x1xf32>
    %110 = vector.broadcast %109 : vector<16x1xf32> to vector<16x16xf32>
    %111 = arith.subf %107, %110 : vector<16x16xf32>
    %112 = math.exp %111 : vector<16x16xf32>
    %cst_61 = arith.constant dense<0.000000e+00> : vector<16xf32>
    %113 = vector.multi_reduction <add>, %112, %cst_61 [1] : vector<16x16xf32> to vector<16xf32>
    %114 = vector.shape_cast %113 : vector<16xf32> to vector<16x1xf32>
    %115 = tpu.reciprocal %114 : vector<16x1xf32> -> vector<16x1xf32>
    %116 = vector.broadcast %115 : vector<16x1xf32> to vector<16x16xf32>
    %117 = arith.mulf %112, %116 : vector<16x16xf32>
    %cst_62 = arith.constant dense<0.000000e+00> : vector<16x8xf32>
    %118 = tpu.matmul %117, %102, %cst_62 {dimension_numbers = #tpu.dot_dimension_numbers<[1], [0], [0], [1], [0, 0, 1, 1], [], []>} : vector<16x16xf32>, vector<16x8xf32>, vector<16x8xf32> -> vector<16x8xf32>
    %119 = vector.extract_strided_slice %87 {offsets = [0, 0], sizes = [8, 8], strides = [1, 1]} : vector<8x32xf32> to vector<8x8xf32>
    %120 = vector.extract_strided_slice %89 {offsets = [0, 0], sizes = [8, 8], strides = [1, 1]} : vector<8x32xf32> to vector<8x8xf32>
    %121 = vector.extract_strided_slice %81 {offsets = [0, 0], sizes = [8, 8], strides = [1, 1]} : vector<8x32xf32> to vector<8x8xf32>
    %cst_63 = arith.constant dense<0.000000e+00> : vector<8x8xf32>
    %122 = tpu.matmul %119, %120, %cst_63 {dimension_numbers = #tpu.dot_dimension_numbers<[1], [1], [0], [0], [0, 0, 1, 0], [], []>} : vector<8x8xf32>, vector<8x8xf32>, vector<8x8xf32> -> vector<8x8xf32>
    %123 = vector.broadcast %11 : vector<1x8xf32> to vector<8x8xf32>
    %124 = arith.addf %122, %123 : vector<8x8xf32>
    %cst_64 = arith.constant 0.353553385 : f32
    %125 = vector.broadcast %cst_64 : f32 to vector<8x8xf32>
    %126 = arith.mulf %124, %125 : vector<8x8xf32>
    %cst_65 = arith.constant dense<0xFF800000> : vector<8xf32>
    %127 = vector.multi_reduction <maximumf>, %126, %cst_65 [1] : vector<8x8xf32> to vector<8xf32>
    %128 = vector.shape_cast %127 : vector<8xf32> to vector<8x1xf32>
    %129 = vector.broadcast %128 : vector<8x1xf32> to vector<8x8xf32>
    %130 = arith.subf %126, %129 : vector<8x8xf32>
    %131 = math.exp %130 : vector<8x8xf32>
    %cst_66 = arith.constant dense<0.000000e+00> : vector<8xf32>
    %132 = vector.multi_reduction <add>, %131, %cst_66 [1] : vector<8x8xf32> to vector<8xf32>
    %133 = vector.shape_cast %132 : vector<8xf32> to vector<8x1xf32>
    %134 = tpu.reciprocal %133 : vector<8x1xf32> -> vector<8x1xf32>
    %135 = vector.broadcast %134 : vector<8x1xf32> to vector<8x8xf32>
    %136 = arith.mulf %131, %135 : vector<8x8xf32>
    %cst_67 = arith.constant dense<0.000000e+00> : vector<8x8xf32>
    %137 = tpu.matmul %136, %121, %cst_67 {dimension_numbers = #tpu.dot_dimension_numbers<[1], [0], [0], [1], [0, 0, 1, 1], [], []>} : vector<8x8xf32>, vector<8x8xf32>, vector<8x8xf32> -> vector<8x8xf32>
    %138 = vector.extract_strided_slice %90 {offsets = [0, 0], sizes = [8, 32], strides = [1, 1]} : vector<32x32xf32> to vector<8x32xf32>
    %cst_68 = arith.constant dense<0.000000e+00> : vector<16x32xf32>
    %139 = tpu.matmul %118, %138, %cst_68 {dimension_numbers = #tpu.dot_dimension_numbers<[1], [0], [0], [1], [0, 0, 1, 1], [], []>} : vector<16x8xf32>, vector<8x32xf32>, vector<16x32xf32> -> vector<16x32xf32>
    %140 = arith.addf %95, %139 : vector<16x32xf32>
    %141 = vector.extract_strided_slice %91 {offsets = [0, 0], sizes = [8, 32], strides = [1, 1]} : vector<32x32xf32> to vector<8x32xf32>
    %cst_69 = arith.constant dense<0.000000e+00> : vector<8x32xf32>
    %142 = tpu.matmul %137, %141, %cst_69 {dimension_numbers = #tpu.dot_dimension_numbers<[1], [0], [0], [1], [0, 0, 1, 1], [], []>} : vector<8x8xf32>, vector<8x32xf32>, vector<8x32xf32> -> vector<8x32xf32>
    %143 = arith.addf %99, %142 : vector<8x32xf32>
    %144 = vector.extract_strided_slice %83 {offsets = [0, 8], sizes = [16, 8], strides = [1, 1]} : vector<16x32xf32> to vector<16x8xf32>
    %145 = vector.extract_strided_slice %85 {offsets = [0, 8], sizes = [16, 8], strides = [1, 1]} : vector<16x32xf32> to vector<16x8xf32>
    %146 = vector.extract_strided_slice %78 {offsets = [0, 8], sizes = [16, 8], strides = [1, 1]} : vector<16x32xf32> to vector<16x8xf32>
    %cst_70 = arith.constant dense<0.000000e+00> : vector<16x16xf32>
    %147 = tpu.matmul %144, %145, %cst_70 {dimension_numbers = #tpu.dot_dimension_numbers<[1], [1], [0], [0], [0, 0, 1, 0], [], []>} : vector<16x8xf32>, vector<16x8xf32>, vector<16x16xf32> -> vector<16x16xf32>
    %148 = vector.broadcast %9 : vector<1x16xf32> to vector<16x16xf32>
    %149 = arith.addf %147, %148 : vector<16x16xf32>
    %cst_71 = arith.constant 0.353553385 : f32
    %150 = vector.broadcast %cst_71 : f32 to vector<16x16xf32>
    %151 = arith.mulf %149, %150 : vector<16x16xf32>
    %cst_72 = arith.constant dense<0xFF800000> : vector<16xf32>
    %152 = vector.multi_reduction <maximumf>, %151, %cst_72 [1] : vector<16x16xf32> to vector<16xf32>
    %153 = vector.shape_cast %152 : vector<16xf32> to vector<16x1xf32>
    %154 = vector.broadcast %153 : vector<16x1xf32> to vector<16x16xf32>
    %155 = arith.subf %151, %154 : vector<16x16xf32>
    %156 = math.exp %155 : vector<16x16xf32>
    %cst_73 = arith.constant dense<0.000000e+00> : vector<16xf32>
    %157 = vector.multi_reduction <add>, %156, %cst_73 [1] : vector<16x16xf32> to vector<16xf32>
    %158 = vector.shape_cast %157 : vector<16xf32> to vector<16x1xf32>
    %159 = tpu.reciprocal %158 : vector<16x1xf32> -> vector<16x1xf32>
    %160 = vector.broadcast %159 : vector<16x1xf32> to vector<16x16xf32>
    %161 = arith.mulf %156, %160 : vector<16x16xf32>
    %cst_74 = arith.constant dense<0.000000e+00> : vector<16x8xf32>
    %162 = tpu.matmul %161, %146, %cst_74 {dimension_numbers = #tpu.dot_dimension_numbers<[1], [0], [0], [1], [0, 0, 1, 1], [], []>} : vector<16x16xf32>, vector<16x8xf32>, vector<16x8xf32> -> vector<16x8xf32>
    %163 = vector.extract_strided_slice %87 {offsets = [0, 8], sizes = [8, 8], strides = [1, 1]} : vector<8x32xf32> to vector<8x8xf32>
    %164 = vector.extract_strided_slice %89 {offsets = [0, 8], sizes = [8, 8], strides = [1, 1]} : vector<8x32xf32> to vector<8x8xf32>
    %165 = vector.extract_strided_slice %81 {offsets = [0, 8], sizes = [8, 8], strides = [1, 1]} : vector<8x32xf32> to vector<8x8xf32>
    %cst_75 = arith.constant dense<0.000000e+00> : vector<8x8xf32>
    %166 = tpu.matmul %163, %164, %cst_75 {dimension_numbers = #tpu.dot_dimension_numbers<[1], [1], [0], [0], [0, 0, 1, 0], [], []>} : vector<8x8xf32>, vector<8x8xf32>, vector<8x8xf32> -> vector<8x8xf32>
    %167 = vector.broadcast %11 : vector<1x8xf32> to vector<8x8xf32>
    %168 = arith.addf %166, %167 : vector<8x8xf32>
    %cst_76 = arith.constant 0.353553385 : f32
    %169 = vector.broadcast %cst_76 : f32 to vector<8x8xf32>
    %170 = arith.mulf %168, %169 : vector<8x8xf32>
    %cst_77 = arith.constant dense<0xFF800000> : vector<8xf32>
    %171 = vector.multi_reduction <maximumf>, %170, %cst_77 [1] : vector<8x8xf32> to vector<8xf32>
    %172 = vector.shape_cast %171 : vector<8xf32> to vector<8x1xf32>
    %173 = vector.broadcast %172 : vector<8x1xf32> to vector<8x8xf32>
    %174 = arith.subf %170, %173 : vector<8x8xf32>
    %175 = math.exp %174 : vector<8x8xf32>
    %cst_78 = arith.constant dense<0.000000e+00> : vector<8xf32>
    %176 = vector.multi_reduction <add>, %175, %cst_78 [1] : vector<8x8xf32> to vector<8xf32>
    %177 = vector.shape_cast %176 : vector<8xf32> to vector<8x1xf32>
    %178 = tpu.reciprocal %177 : vector<8x1xf32> -> vector<8x1xf32>
    %179 = vector.broadcast %178 : vector<8x1xf32> to vector<8x8xf32>
    %180 = arith.mulf %175, %179 : vector<8x8xf32>
    %cst_79 = arith.constant dense<0.000000e+00> : vector<8x8xf32>
    %181 = tpu.matmul %180, %165, %cst_79 {dimension_numbers = #tpu.dot_dimension_numbers<[1], [0], [0], [1], [0, 0, 1, 1], [], []>} : vector<8x8xf32>, vector<8x8xf32>, vector<8x8xf32> -> vector<8x8xf32>
    %182 = vector.extract_strided_slice %90 {offsets = [8, 0], sizes = [8, 32], strides = [1, 1]} : vector<32x32xf32> to vector<8x32xf32>
    %cst_80 = arith.constant dense<0.000000e+00> : vector<16x32xf32>
    %183 = tpu.matmul %162, %182, %cst_80 {dimension_numbers = #tpu.dot_dimension_numbers<[1], [0], [0], [1], [0, 0, 1, 1], [], []>} : vector<16x8xf32>, vector<8x32xf32>, vector<16x32xf32> -> vector<16x32xf32>
    %184 = arith.addf %140, %183 : vector<16x32xf32>
    %185 = vector.extract_strided_slice %91 {offsets = [8, 0], sizes = [8, 32], strides = [1, 1]} : vector<32x32xf32> to vector<8x32xf32>
    %cst_81 = arith.constant dense<0.000000e+00> : vector<8x32xf32>
    %186 = tpu.matmul %181, %185, %cst_81 {dimension_numbers = #tpu.dot_dimension_numbers<[1], [0], [0], [1], [0, 0, 1, 1], [], []>} : vector<8x8xf32>, vector<8x32xf32>, vector<8x32xf32> -> vector<8x32xf32>
    %187 = arith.addf %143, %186 : vector<8x32xf32>
    %188 = vector.extract_strided_slice %83 {offsets = [0, 16], sizes = [16, 8], strides = [1, 1]} : vector<16x32xf32> to vector<16x8xf32>
    %189 = vector.extract_strided_slice %85 {offsets = [0, 16], sizes = [16, 8], strides = [1, 1]} : vector<16x32xf32> to vector<16x8xf32>
    %190 = vector.extract_strided_slice %78 {offsets = [0, 16], sizes = [16, 8], strides = [1, 1]} : vector<16x32xf32> to vector<16x8xf32>
    %cst_82 = arith.constant dense<0.000000e+00> : vector<16x16xf32>
    %191 = tpu.matmul %188, %189, %cst_82 {dimension_numbers = #tpu.dot_dimension_numbers<[1], [1], [0], [0], [0, 0, 1, 0], [], []>} : vector<16x8xf32>, vector<16x8xf32>, vector<16x16xf32> -> vector<16x16xf32>
    %192 = vector.broadcast %9 : vector<1x16xf32> to vector<16x16xf32>
    %193 = arith.addf %191, %192 : vector<16x16xf32>
    %cst_83 = arith.constant 0.353553385 : f32
    %194 = vector.broadcast %cst_83 : f32 to vector<16x16xf32>
    %195 = arith.mulf %193, %194 : vector<16x16xf32>
    %cst_84 = arith.constant dense<0xFF800000> : vector<16xf32>
    %196 = vector.multi_reduction <maximumf>, %195, %cst_84 [1] : vector<16x16xf32> to vector<16xf32>
    %197 = vector.shape_cast %196 : vector<16xf32> to vector<16x1xf32>
    %198 = vector.broadcast %197 : vector<16x1xf32> to vector<16x16xf32>
    %199 = arith.subf %195, %198 : vector<16x16xf32>
    %200 = math.exp %199 : vector<16x16xf32>
    %cst_85 = arith.constant dense<0.000000e+00> : vector<16xf32>
    %201 = vector.multi_reduction <add>, %200, %cst_85 [1] : vector<16x16xf32> to vector<16xf32>
    %202 = vector.shape_cast %201 : vector<16xf32> to vector<16x1xf32>
    %203 = tpu.reciprocal %202 : vector<16x1xf32> -> vector<16x1xf32>
    %204 = vector.broadcast %203 : vector<16x1xf32> to vector<16x16xf32>
    %205 = arith.mulf %200, %204 : vector<16x16xf32>
    %cst_86 = arith.constant dense<0.000000e+00> : vector<16x8xf32>
    %206 = tpu.matmul %205, %190, %cst_86 {dimension_numbers = #tpu.dot_dimension_numbers<[1], [0], [0], [1], [0, 0, 1, 1], [], []>} : vector<16x16xf32>, vector<16x8xf32>, vector<16x8xf32> -> vector<16x8xf32>
    %207 = vector.extract_strided_slice %87 {offsets = [0, 16], sizes = [8, 8], strides = [1, 1]} : vector<8x32xf32> to vector<8x8xf32>
    %208 = vector.extract_strided_slice %89 {offsets = [0, 16], sizes = [8, 8], strides = [1, 1]} : vector<8x32xf32> to vector<8x8xf32>
    %209 = vector.extract_strided_slice %81 {offsets = [0, 16], sizes = [8, 8], strides = [1, 1]} : vector<8x32xf32> to vector<8x8xf32>
    %cst_87 = arith.constant dense<0.000000e+00> : vector<8x8xf32>
    %210 = tpu.matmul %207, %208, %cst_87 {dimension_numbers = #tpu.dot_dimension_numbers<[1], [1], [0], [0], [0, 0, 1, 0], [], []>} : vector<8x8xf32>, vector<8x8xf32>, vector<8x8xf32> -> vector<8x8xf32>
    %211 = vector.broadcast %11 : vector<1x8xf32> to vector<8x8xf32>
    %212 = arith.addf %210, %211 : vector<8x8xf32>
    %cst_88 = arith.constant 0.353553385 : f32
    %213 = vector.broadcast %cst_88 : f32 to vector<8x8xf32>
    %214 = arith.mulf %212, %213 : vector<8x8xf32>
    %cst_89 = arith.constant dense<0xFF800000> : vector<8xf32>
    %215 = vector.multi_reduction <maximumf>, %214, %cst_89 [1] : vector<8x8xf32> to vector<8xf32>
    %216 = vector.shape_cast %215 : vector<8xf32> to vector<8x1xf32>
    %217 = vector.broadcast %216 : vector<8x1xf32> to vector<8x8xf32>
    %218 = arith.subf %214, %217 : vector<8x8xf32>
    %219 = math.exp %218 : vector<8x8xf32>
    %cst_90 = arith.constant dense<0.000000e+00> : vector<8xf32>
    %220 = vector.multi_reduction <add>, %219, %cst_90 [1] : vector<8x8xf32> to vector<8xf32>
    %221 = vector.shape_cast %220 : vector<8xf32> to vector<8x1xf32>
    %222 = tpu.reciprocal %221 : vector<8x1xf32> -> vector<8x1xf32>
    %223 = vector.broadcast %222 : vector<8x1xf32> to vector<8x8xf32>
    %224 = arith.mulf %219, %223 : vector<8x8xf32>
    %cst_91 = arith.constant dense<0.000000e+00> : vector<8x8xf32>
    %225 = tpu.matmul %224, %209, %cst_91 {dimension_numbers = #tpu.dot_dimension_numbers<[1], [0], [0], [1], [0, 0, 1, 1], [], []>} : vector<8x8xf32>, vector<8x8xf32>, vector<8x8xf32> -> vector<8x8xf32>
    %226 = vector.extract_strided_slice %90 {offsets = [16, 0], sizes = [8, 32], strides = [1, 1]} : vector<32x32xf32> to vector<8x32xf32>
    %cst_92 = arith.constant dense<0.000000e+00> : vector<16x32xf32>
    %227 = tpu.matmul %206, %226, %cst_92 {dimension_numbers = #tpu.dot_dimension_numbers<[1], [0], [0], [1], [0, 0, 1, 1], [], []>} : vector<16x8xf32>, vector<8x32xf32>, vector<16x32xf32> -> vector<16x32xf32>
    %228 = arith.addf %184, %227 : vector<16x32xf32>
    %229 = vector.extract_strided_slice %91 {offsets = [16, 0], sizes = [8, 32], strides = [1, 1]} : vector<32x32xf32> to vector<8x32xf32>
    %cst_93 = arith.constant dense<0.000000e+00> : vector<8x32xf32>
    %230 = tpu.matmul %225, %229, %cst_93 {dimension_numbers = #tpu.dot_dimension_numbers<[1], [0], [0], [1], [0, 0, 1, 1], [], []>} : vector<8x8xf32>, vector<8x32xf32>, vector<8x32xf32> -> vector<8x32xf32>
    %231 = arith.addf %187, %230 : vector<8x32xf32>
    %232 = vector.extract_strided_slice %83 {offsets = [0, 24], sizes = [16, 8], strides = [1, 1]} : vector<16x32xf32> to vector<16x8xf32>
    %233 = vector.extract_strided_slice %85 {offsets = [0, 24], sizes = [16, 8], strides = [1, 1]} : vector<16x32xf32> to vector<16x8xf32>
    %234 = vector.extract_strided_slice %78 {offsets = [0, 24], sizes = [16, 8], strides = [1, 1]} : vector<16x32xf32> to vector<16x8xf32>
    %cst_94 = arith.constant dense<0.000000e+00> : vector<16x16xf32>
    %235 = tpu.matmul %232, %233, %cst_94 {dimension_numbers = #tpu.dot_dimension_numbers<[1], [1], [0], [0], [0, 0, 1, 0], [], []>} : vector<16x8xf32>, vector<16x8xf32>, vector<16x16xf32> -> vector<16x16xf32>
    %236 = vector.broadcast %9 : vector<1x16xf32> to vector<16x16xf32>
    %237 = arith.addf %235, %236 : vector<16x16xf32>
    %cst_95 = arith.constant 0.353553385 : f32
    %238 = vector.broadcast %cst_95 : f32 to vector<16x16xf32>
    %239 = arith.mulf %237, %238 : vector<16x16xf32>
    %cst_96 = arith.constant dense<0xFF800000> : vector<16xf32>
    %240 = vector.multi_reduction <maximumf>, %239, %cst_96 [1] : vector<16x16xf32> to vector<16xf32>
    %241 = vector.shape_cast %240 : vector<16xf32> to vector<16x1xf32>
    %242 = vector.broadcast %241 : vector<16x1xf32> to vector<16x16xf32>
    %243 = arith.subf %239, %242 : vector<16x16xf32>
    %244 = math.exp %243 : vector<16x16xf32>
    %cst_97 = arith.constant dense<0.000000e+00> : vector<16xf32>
    %245 = vector.multi_reduction <add>, %244, %cst_97 [1] : vector<16x16xf32> to vector<16xf32>
    %246 = vector.shape_cast %245 : vector<16xf32> to vector<16x1xf32>
    %247 = tpu.reciprocal %246 : vector<16x1xf32> -> vector<16x1xf32>
    %248 = vector.broadcast %247 : vector<16x1xf32> to vector<16x16xf32>
    %249 = arith.mulf %244, %248 : vector<16x16xf32>
    %cst_98 = arith.constant dense<0.000000e+00> : vector<16x8xf32>
    %250 = tpu.matmul %249, %234, %cst_98 {dimension_numbers = #tpu.dot_dimension_numbers<[1], [0], [0], [1], [0, 0, 1, 1], [], []>} : vector<16x16xf32>, vector<16x8xf32>, vector<16x8xf32> -> vector<16x8xf32>
    %251 = vector.extract_strided_slice %87 {offsets = [0, 24], sizes = [8, 8], strides = [1, 1]} : vector<8x32xf32> to vector<8x8xf32>
    %252 = vector.extract_strided_slice %89 {offsets = [0, 24], sizes = [8, 8], strides = [1, 1]} : vector<8x32xf32> to vector<8x8xf32>
    %253 = vector.extract_strided_slice %81 {offsets = [0, 24], sizes = [8, 8], strides = [1, 1]} : vector<8x32xf32> to vector<8x8xf32>
    %cst_99 = arith.constant dense<0.000000e+00> : vector<8x8xf32>
    %254 = tpu.matmul %251, %252, %cst_99 {dimension_numbers = #tpu.dot_dimension_numbers<[1], [1], [0], [0], [0, 0, 1, 0], [], []>} : vector<8x8xf32>, vector<8x8xf32>, vector<8x8xf32> -> vector<8x8xf32>
    %255 = vector.broadcast %11 : vector<1x8xf32> to vector<8x8xf32>
    %256 = arith.addf %254, %255 : vector<8x8xf32>
    %cst_100 = arith.constant 0.353553385 : f32
    %257 = vector.broadcast %cst_100 : f32 to vector<8x8xf32>
    %258 = arith.mulf %256, %257 : vector<8x8xf32>
    %cst_101 = arith.constant dense<0xFF800000> : vector<8xf32>
    %259 = vector.multi_reduction <maximumf>, %258, %cst_101 [1] : vector<8x8xf32> to vector<8xf32>
    %260 = vector.shape_cast %259 : vector<8xf32> to vector<8x1xf32>
    %261 = vector.broadcast %260 : vector<8x1xf32> to vector<8x8xf32>
    %262 = arith.subf %258, %261 : vector<8x8xf32>
    %263 = math.exp %262 : vector<8x8xf32>
    %cst_102 = arith.constant dense<0.000000e+00> : vector<8xf32>
    %264 = vector.multi_reduction <add>, %263, %cst_102 [1] : vector<8x8xf32> to vector<8xf32>
    %265 = vector.shape_cast %264 : vector<8xf32> to vector<8x1xf32>
    %266 = tpu.reciprocal %265 : vector<8x1xf32> -> vector<8x1xf32>
    %267 = vector.broadcast %266 : vector<8x1xf32> to vector<8x8xf32>
    %268 = arith.mulf %263, %267 : vector<8x8xf32>
    %cst_103 = arith.constant dense<0.000000e+00> : vector<8x8xf32>
    %269 = tpu.matmul %268, %253, %cst_103 {dimension_numbers = #tpu.dot_dimension_numbers<[1], [0], [0], [1], [0, 0, 1, 1], [], []>} : vector<8x8xf32>, vector<8x8xf32>, vector<8x8xf32> -> vector<8x8xf32>
    %270 = vector.extract_strided_slice %90 {offsets = [24, 0], sizes = [8, 32], strides = [1, 1]} : vector<32x32xf32> to vector<8x32xf32>
    %cst_104 = arith.constant dense<0.000000e+00> : vector<16x32xf32>
    %271 = tpu.matmul %250, %270, %cst_104 {dimension_numbers = #tpu.dot_dimension_numbers<[1], [0], [0], [1], [0, 0, 1, 1], [], []>} : vector<16x8xf32>, vector<8x32xf32>, vector<16x32xf32> -> vector<16x32xf32>
    %272 = arith.addf %228, %271 : vector<16x32xf32>
    %273 = vector.extract_strided_slice %91 {offsets = [24, 0], sizes = [8, 32], strides = [1, 1]} : vector<32x32xf32> to vector<8x32xf32>
    %cst_105 = arith.constant dense<0.000000e+00> : vector<8x32xf32>
    %274 = tpu.matmul %269, %273, %cst_105 {dimension_numbers = #tpu.dot_dimension_numbers<[1], [0], [0], [1], [0, 0, 1, 1], [], []>} : vector<8x8xf32>, vector<8x32xf32>, vector<8x32xf32> -> vector<8x32xf32>
    %275 = arith.addf %231, %274 : vector<8x32xf32>
    %c0_106 = arith.constant 0 : index
    %c0_107 = arith.constant 0 : index
    %c0_108 = arith.constant 0 : index
    %276 = vector.load %arg19[%c0_106, %c0_107, %c0_108] : memref<1x16x32xf32, #tpu.memory_space<vmem>>, vector<1x16x32xf32>
    %277 = vector.shape_cast %276 : vector<1x16x32xf32> to vector<16x32xf32>
    %278 = vector.shape_cast %272 : vector<16x32xf32> to vector<1x16x32xf32>
    tpu.vector_store %arg19[%c0_106, %c0_107, %c0_108], %278 {strides = array<i32>} : memref<1x16x32xf32, #tpu.memory_space<vmem>>, vector<1x16x32xf32>,
    %c0_109 = arith.constant 0 : index
    %c0_110 = arith.constant 0 : index
    %c0_111 = arith.constant 0 : index
    %279 = vector.load %arg20[%c0_109, %c0_110, %c0_111] : memref<1x8x32xf32, #tpu.memory_space<vmem>>, vector<1x8x32xf32>
    %280 = vector.shape_cast %279 : vector<1x8x32xf32> to vector<8x32xf32>
    %281 = vector.shape_cast %275 : vector<8x32xf32> to vector<1x8x32xf32>
    tpu.vector_store %arg20[%c0_109, %c0_110, %c0_111], %281 {strides = array<i32>} : memref<1x8x32xf32, #tpu.memory_space<vmem>>, vector<1x8x32xf32>,
    return
  }
  func.func @transform_0(%arg0: i32) -> (i32, i32, i32) {
    %c0_i32 = arith.constant 0 : i32
    %c0_i32_0 = arith.constant 0 : i32
    %c0_i32_1 = arith.constant 0 : i32
    return %arg0, %c0_i32, %c0_i32_0 : i32, i32, i32
  }
  func.func @transform_1(%arg0: i32) -> (i32, i32, i32) {
    %c0_i32 = arith.constant 0 : i32
    %c0_i32_0 = arith.constant 0 : i32
    %c0_i32_1 = arith.constant 0 : i32
    return %arg0, %c0_i32, %c0_i32_0 : i32, i32, i32
  }
  func.func @transform_2(%arg0: i32) -> (i32, i32, i32) {
    %c0_i32 = arith.constant 0 : i32
    %c0_i32_0 = arith.constant 0 : i32
    %c0_i32_1 = arith.constant 0 : i32
    return %arg0, %c0_i32, %c0_i32_0 : i32, i32, i32
  }
  func.func @transform_3(%arg0: i32) -> (i32, i32, i32) {
    %c0_i32 = arith.constant 0 : i32
    %c0_i32_0 = arith.constant 0 : i32
    %c0_i32_1 = arith.constant 0 : i32
    return %arg0, %c0_i32, %c0_i32_0 : i32, i32, i32
  }
  func.func @transform_4(%arg0: i32) -> (i32, i32, i32) {
    %c0_i32 = arith.constant 0 : i32
    %c0_i32_0 = arith.constant 0 : i32
    %c0_i32_1 = arith.constant 0 : i32
    return %arg0, %c0_i32, %c0_i32_0 : i32, i32, i32
  }
  func.func @transform_5(%arg0: i32) -> (i32, i32, i32) {
    %c0_i32 = arith.constant 0 : i32
    %c0_i32_0 = arith.constant 0 : i32
    %c0_i32_1 = arith.constant 0 : i32
    return %arg0, %c0_i32, %c0_i32_0 : i32, i32, i32
  }
  func.func @transform_6(%arg0: i32) -> (i32, i32) {
    %c0_i32 = arith.constant 0 : i32
    %c0_i32_0 = arith.constant 0 : i32
    %c0_i32_1 = arith.constant 0 : i32
    return %c0_i32, %c0_i32_0 : i32, i32
  }
  func.func @transform_7(%arg0: i32) -> (i32, i32) {
    %c0_i32 = arith.constant 0 : i32
    %c0_i32_0 = arith.constant 0 : i32
    %c0_i32_1 = arith.constant 0 : i32
    return %c0_i32, %c0_i32_0 : i32, i32
  }
  func.func @transform_8(%arg0: i32) -> (i32, i32) {
    %c0_i32 = arith.constant 0 : i32
    %c0_i32_0 = arith.constant 0 : i32
    %c0_i32_1 = arith.constant 0 : i32
    return %c0_i32, %c0_i32_0 : i32, i32
  }
  func.func @transform_9(%arg0: i32) -> (i32, i32) {
    %c0_i32 = arith.constant 0 : i32
    %c0_i32_0 = arith.constant 0 : i32
    %c0_i32_1 = arith.constant 0 : i32
    return %c0_i32, %c0_i32_0 : i32, i32
  }
  func.func @transform_10(%arg0: i32) -> (i32, i32) {
    %c0_i32 = arith.constant 0 : i32
    %c0_i32_0 = arith.constant 0 : i32
    %c0_i32_1 = arith.constant 0 : i32
    return %c0_i32, %c0_i32_0 : i32, i32
  }
  func.func @transform_11(%arg0: i32) -> (i32, i32) {
    %c0_i32 = arith.constant 0 : i32
    %c0_i32_0 = arith.constant 0 : i32
    %c0_i32_1 = arith.constant 0 : i32
    return %c0_i32, %c0_i32_0 : i32, i32
  }
  func.func @transform_12(%arg0: i32) -> (i32, i32) {
    %c0_i32 = arith.constant 0 : i32
    %c0_i32_0 = arith.constant 0 : i32
    %c0_i32_1 = arith.constant 0 : i32
    return %c0_i32, %c0_i32_0 : i32, i32
  }
  func.func @transform_13(%arg0: i32) -> (i32, i32) {
    %c0_i32 = arith.constant 0 : i32
    %c0_i32_0 = arith.constant 0 : i32
    %c0_i32_1 = arith.constant 0 : i32
    return %c0_i32, %c0_i32_0 : i32, i32
  }
  func.func @transform_14(%arg0: i32) -> (i32, i32) {
    %c0_i32 = arith.constant 0 : i32
    %c0_i32_0 = arith.constant 0 : i32
    %c0_i32_1 = arith.constant 0 : i32
    return %c0_i32, %c0_i32_0 : i32, i32
  }
  func.func @transform_15(%arg0: i32) -> (i32, i32) {
    %c0_i32 = arith.constant 0 : i32
    %c0_i32_0 = arith.constant 0 : i32
    %c0_i32_1 = arith.constant 0 : i32
    return %c0_i32, %c0_i32_0 : i32, i32
  }
  func.func @transform_16(%arg0: i32) -> (i32, i32) {
    %c0_i32 = arith.constant 0 : i32
    %c0_i32_0 = arith.constant 0 : i32
    %c0_i32_1 = arith.constant 0 : i32
    return %c0_i32, %c0_i32_0 : i32, i32
  }
  func.func @transform_17(%arg0: i32) -> (i32, i32) {
    %c0_i32 = arith.constant 0 : i32
    %c0_i32_0 = arith.constant 0 : i32
    %c0_i32_1 = arith.constant 0 : i32
    return %c0_i32, %c0_i32_0 : i32, i32
  }
  func.func @transform_18(%arg0: i32) -> (i32, i32, i32) {
    %c0_i32 = arith.constant 0 : i32
    %c0_i32_0 = arith.constant 0 : i32
    %c0_i32_1 = arith.constant 0 : i32
    return %arg0, %c0_i32, %c0_i32_0 : i32, i32, i32
  }
  func.func @transform_19(%arg0: i32) -> (i32, i32, i32) {
    %c0_i32 = arith.constant 0 : i32
    %c0_i32_0 = arith.constant 0 : i32
    %c0_i32_1 = arith.constant 0 : i32
    return %arg0, %c0_i32, %c0_i32_0 : i32, i32, i32
  }
}

</mosaic_0001>

<llo_original>
// kernel: tpu_custom_call.1
$region0: #{tpu_custom_call.1}
  #allocation0 [shape = 'u32[]', space=smem, size = 0x4, offset = 0x4, fixed_abs, tag = 'smem constant byte address 0x4 - core index']
  #allocation1 [shape = 'u32[72,128]{1,0:T(1,128)}', space=vmem, size = 0x9000, scoped, tag = 'internal scratch']
  %s0 = inlined_call_operand.vmem [shape: f32[2,16,32], index: 0, kind: input, shape index: {}]
  %s1 = inlined_call_operand.vmem [shape: f32[2,8,32], index: 1, kind: input, shape index: {}]
  %s2 = inlined_call_operand.vmem [shape: f32[2,16,1], index: 2, kind: input, shape index: {}]
  %s3 = inlined_call_operand.vmem [shape: f32[2,8,1], index: 3, kind: input, shape index: {}]
  %s4 = inlined_call_operand.vmem [shape: f32[2,1,16], index: 4, kind: input, shape index: {}]
  %s5 = inlined_call_operand.vmem [shape: f32[2,1,8], index: 5, kind: input, shape index: {}]
  %s6 = inlined_call_operand.hbm [shape: f32[32,32], index: 6, kind: input, shape index: {}]
  %s7 = inlined_call_operand.vmem [shape: f32[1,32], index: 7, kind: input, shape index: {}]
  %s8 = inlined_call_operand.hbm [shape: f32[32,32], index: 8, kind: input, shape index: {}]
  %s9 = inlined_call_operand.vmem [shape: f32[1,32], index: 9, kind: input, shape index: {}]
  %s10 = inlined_call_operand.hbm [shape: f32[32,96], index: 10, kind: input, shape index: {}]
  %s11 = inlined_call_operand.vmem [shape: f32[1,96], index: 11, kind: input, shape index: {}]
  %s12 = inlined_call_operand.hbm [shape: f32[32,96], index: 12, kind: input, shape index: {}]
  %s13 = inlined_call_operand.vmem [shape: f32[1,96], index: 13, kind: input, shape index: {}]
  %s14 = inlined_call_operand.hbm [shape: f32[32,32], index: 14, kind: input, shape index: {}]
  %s15 = inlined_call_operand.vmem [shape: f32[1,32], index: 15, kind: input, shape index: {}]
  %s16 = inlined_call_operand.hbm [shape: f32[32,32], index: 16, kind: input, shape index: {}]
  %s17 = inlined_call_operand.vmem [shape: f32[1,32], index: 17, kind: input, shape index: {}]
  %s18 = inlined_call_operand.hbm [shape: f32[2,16,32], index: 18, kind: output, shape index: {0}]
  %s19 = inlined_call_operand.hbm [shape: f32[2,8,32], index: 19, kind: output, shape index: {1}]
  %20 = xla_tuple %s18, %s19
  %s21 = sld [smem:[#allocation0]]
  $region137: #{tpu_custom_call.1} parent=0
    _
  %s23 = ssub.s32 1, %s21
  %s24 = scalar_select 0, %s23, %s21
  $region1: #{tpu_custom_call.1} parent=0
    #allocation2 [shape = 'u8[16384]{0}', space=vmem, size = 0x4000, scoped, tag = 'input window, operand 6, single buffered']
    #allocation3 [shape = 's32[2]{0}', space=sflag, size = 0x8, scoped, tag = 'scoped memory for tpu_custom_call.1']
    #allocation4 [shape = 's32[2]{0}', space=sflag, size = 0x8, scoped, tag = 'scoped memory for tpu_custom_call.1']
    #allocation5 [shape = 'u8[16384]{0}', space=vmem, size = 0x4000, scoped, tag = 'input window, operand 8, single buffered']
    #allocation6 [shape = 's32[1]{0}', space=sflag, size = 0x4, scoped, tag = 'scoped memory for tpu_custom_call.1']
    #allocation7 [shape = 'u8[16384]{0}', space=vmem, size = 0x4000, scoped, tag = 'input window, operand 10, single buffered']
    #allocation8 [shape = 'u8[16384]{0}', space=vmem, size = 0x4000, scoped, tag = 'input window, operand 12, single buffered']
    #allocation9 [shape = 's32[1]{0}', space=sflag, size = 0x4, scoped, tag = 'scoped memory for tpu_custom_call.1']
    #allocation10 [shape = 'u8[16384]{0}', space=vmem, size = 0x4000, scoped, tag = 'input window, operand 14, single buffered']
    #allocation11 [shape = 'u8[16384]{0}', space=vmem, size = 0x4000, scoped, tag = 'input window, operand 16, single buffered']
    #allocation12 [shape = 's32[1]{0}', space=sflag, size = 0x4, scoped, tag = 'scoped memory for tpu_custom_call.1']
    #allocation13 [shape = 'u8[16384]{0}', space=vmem, size = 0x4000, scoped, tag = 'output window, operand 0']
    #allocation14 [shape = 'u8[8192]{0}', space=vmem, size = 0x2000, scoped, tag = 'output window, operand 1']
    #allocation15 [shape = 's32[2]{0}', space=sflag, size = 0x8, scoped, tag = 'scoped memory for tpu_custom_call.1']
    %25 = vsyncpa [#allocation3], 0
    %26 = vsyncpa [#allocation6], 0
    %27 = vsyncpa [#allocation9], 0
    %28 = vsyncpa [#allocation12], 0
    %29 = vsyncpa [#allocation4], 0
    %s30 = scalar_lea.sflag [#allocation4], 1
    %31 = vsyncpa %s30, 0
    %32 = vsyncpa [#allocation15], 0
    %s33 = scalar_lea.sflag [#allocation15], 1
    %34 = vsyncpa %s33, 0
    loop: start=0, step=1, limit=4
    $region2: #{tpu_custom_call.1} parent=1 // loop_pre_header
      _
    $region3: #{tpu_custom_call.1} parent=1 // loop_header
      %s36 = sphi 0, %s40
      %p37 = scmp.ge.s32.totalorder %s36, 4
      %s46 = sphi 0, %s48
      %s49 = sphi 0, %s46
      %s50 = sphi 0, %s49
      %s66 = sphi 0, %s50
      %s72 = sphi 0, %s74
      %s75 = sphi 0, %s72
      %s76 = sphi 0, %s75
      %s92 = sphi 0, %s76
      %s98 = sphi 0, %s100
      %s101 = sphi 0, %s98
      %s102 = sphi 0, %s101
      %s118 = sphi 0, %s102
      %s124 = sphi 0, %s126
      %s127 = sphi 0, %s124
      %s128 = sphi 0, %s127
      %s144 = sphi 0, %s128
      %s150 = sphi 0, %s152
      %s153 = sphi 0, %s150
      %s154 = sphi 0, %s153
      %s170 = sphi 0, %s154
      %s176 = sphi 0, %s178
      %s179 = sphi 0, %s176
      %s180 = sphi 0, %s179
      %s196 = sphi 0, %s180
      %s200 = sphi 0, %s200
      %s202 = sphi 0, %s200
      %s203 = sphi 0, %s202
      %s217 = sphi 0, %s203
      %s221 = sphi 0, %s221
      %s223 = sphi 0, %s221
      %s224 = sphi 0, %s223
      %s238 = sphi 0, %s224
      %s242 = sphi 0, %s242
      %s244 = sphi 0, %s242
      %s245 = sphi 0, %s244
      %s259 = sphi 0, %s245
      %s263 = sphi 0, %s263
      %s265 = sphi 0, %s263
      %s266 = sphi 0, %s265
      %s280 = sphi 0, %s266
      %s284 = sphi 0, %s284
      %s286 = sphi 0, %s284
      %s287 = sphi 0, %s286
      %s301 = sphi 0, %s287
      %s305 = sphi 0, %s305
      %s307 = sphi 0, %s305
      %s308 = sphi 0, %s307
      %s322 = sphi 0, %s308
      %s326 = sphi 0, %s326
      %s328 = sphi 0, %s326
      %s329 = sphi 0, %s328
      %s343 = sphi 0, %s329
      %s347 = sphi 0, %s347
      %s349 = sphi 0, %s347
      %s350 = sphi 0, %s349
      %s364 = sphi 0, %s350
      %s368 = sphi 0, %s368
      %s370 = sphi 0, %s368
      %s371 = sphi 0, %s370
      %s385 = sphi 0, %s371
      %s389 = sphi 0, %s389
      %s391 = sphi 0, %s389
      %s392 = sphi 0, %s391
      %s406 = sphi 0, %s392
      %s410 = sphi 0, %s410
      %s412 = sphi 0, %s410
      %s413 = sphi 0, %s412
      %s427 = sphi 0, %s413
      %s431 = sphi 0, %s431
      %s433 = sphi 0, %s431
      %s434 = sphi 0, %s433
      %s448 = sphi 0, %s434
      %s454 = sphi 0, %s456
      %s457 = sphi 0, %s454
      %s458 = sphi 0, %s457
      %s474 = sphi 0, %s458
      %s480 = sphi 0, %s482
      %s483 = sphi 0, %s480
      %s484 = sphi 0, %s483
      %s500 = sphi 0, %s484
    $region4: #{tpu_custom_call.1} parent=1 // loop_header_branch
      %39 = sbr.rel (%p37) target = $region8
    $region5: #{tpu_custom_call.1} parent=1 // loop_body
      %s41 = ssub.s32 %s36, 1
      %s42 = ssub.s32 %s36, 2
      %s43 = sadd.s32 %s36, 1
      %s44 = ssub.s32 %s36, %s43
      %p45 = scmp.eq.s32.totalorder %s44, 0
      %s47 = sadd.s32 %s46, 1
      %s48 = scalar_select %p45, %s46, %s47
      %p51 = pneg %p45
      %p52 = scmp.eq.s32.totalorder %s36, 1
      %p53 = por %p51, %p52
      %p54 = scmp.ne.s32.totalorder %s46, %s49
      %p55 = scmp.eq.s32.totalorder %s36, 0
      %p56 = por %p54, %p55
      %p57 = scmp.ne.s32.totalorder %s46, %s49
      %p58 = scmp.eq.s32.totalorder %s41, 1
      %p59 = por %p57, %p58
      %p60 = scmp.ne.s32.totalorder %s49, %s50
      %p61 = scmp.eq.s32.totalorder %s41, 0
      %p62 = por %p60, %p61
      %p63 = scmp.ne.s32.totalorder %s49, %s50
      %p64 = scmp.eq.s32.totalorder %s42, 1
      %p65 = por %p63, %p64
      %p67 = scmp.ne.s32.totalorder %s50, %s66
      %p68 = scmp.eq.s32.totalorder %s42, 0
      %p69 = por %p67, %p68
      %s70 = ssub.s32 %s36, %s43
      %p71 = scmp.eq.s32.totalorder %s70, 0
      %s73 = sadd.s32 %s72, 1
      %s74 = scalar_select %p71, %s72, %s73
      %p77 = pneg %p71
      %p78 = scmp.eq.s32.totalorder %s36, 1
      %p79 = por %p77, %p78
      %p80 = scmp.ne.s32.totalorder %s72, %s75
      %p81 = scmp.eq.s32.totalorder %s36, 0
      %p82 = por %p80, %p81
      %p83 = scmp.ne.s32.totalorder %s72, %s75
      %p84 = scmp.eq.s32.totalorder %s41, 1
      %p85 = por %p83, %p84
      %p86 = scmp.ne.s32.totalorder %s75, %s76
      %p87 = scmp.eq.s32.totalorder %s41, 0
      %p88 = por %p86, %p87
      %p89 = scmp.ne.s32.totalorder %s75, %s76
      %p90 = scmp.eq.s32.totalorder %s42, 1
      %p91 = por %p89, %p90
      %p93 = scmp.ne.s32.totalorder %s76, %s92
      %p94 = scmp.eq.s32.totalorder %s42, 0
      %p95 = por %p93, %p94
      %s96 = ssub.s32 %s36, %s43
      %p97 = scmp.eq.s32.totalorder %s96, 0
      %s99 = sadd.s32 %s98, 1
      %s100 = scalar_select %p97, %s98, %s99
      %p103 = pneg %p97
      %p104 = scmp.eq.s32.totalorder %s36, 1
      %p105 = por %p103, %p104
      %p106 = scmp.ne.s32.totalorder %s98, %s101
      %p107 = scmp.eq.s32.totalorder %s36, 0
      %p108 = por %p106, %p107
      %p109 = scmp.ne.s32.totalorder %s98, %s101
      %p110 = scmp.eq.s32.totalorder %s41, 1
      %p111 = por %p109, %p110
      %p112 = scmp.ne.s32.totalorder %s101, %s102
      %p113 = scmp.eq.s32.totalorder %s41, 0
      %p114 = por %p112, %p113
      %p115 = scmp.ne.s32.totalorder %s101, %s102
      %p116 = scmp.eq.s32.totalorder %s42, 1
      %p117 = por %p115, %p116
      %p119 = scmp.ne.s32.totalorder %s102, %s118
      %p120 = scmp.eq.s32.totalorder %s42, 0
      %p121 = por %p119, %p120
      %s122 = ssub.s32 %s36, %s43
      %p123 = scmp.eq.s32.totalorder %s122, 0
      %s125 = sadd.s32 %s124, 1
      %s126 = scalar_select %p123, %s124, %s125
      %p129 = pneg %p123
      %p130 = scmp.eq.s32.totalorder %s36, 1
      %p131 = por %p129, %p130
      %p132 = scmp.ne.s32.totalorder %s124, %s127
      %p133 = scmp.eq.s32.totalorder %s36, 0
      %p134 = por %p132, %p133
      %p135 = scmp.ne.s32.totalorder %s124, %s127
      %p136 = scmp.eq.s32.totalorder %s41, 1
      %p137 = por %p135, %p136
      %p138 = scmp.ne.s32.totalorder %s127, %s128
      %p139 = scmp.eq.s32.totalorder %s41, 0
      %p140 = por %p138, %p139
      %p141 = scmp.ne.s32.totalorder %s127, %s128
      %p142 = scmp.eq.s32.totalorder %s42, 1
      %p143 = por %p141, %p142
      %p145 = scmp.ne.s32.totalorder %s128, %s144
      %p146 = scmp.eq.s32.totalorder %s42, 0
      %p147 = por %p145, %p146
      %s148 = ssub.s32 %s36, %s43
      %p149 = scmp.eq.s32.totalorder %s148, 0
      %s151 = sadd.s32 %s150, 1
      %s152 = scalar_select %p149, %s150, %s151
      %p155 = pneg %p149
      %p156 = scmp.eq.s32.totalorder %s36, 1
      %p157 = por %p155, %p156
      %p158 = scmp.ne.s32.totalorder %s150, %s153
      %p159 = scmp.eq.s32.totalorder %s36, 0
      %p160 = por %p158, %p159
      %p161 = scmp.ne.s32.totalorder %s150, %s153
      %p162 = scmp.eq.s32.totalorder %s41, 1
      %p163 = por %p161, %p162
      %p164 = scmp.ne.s32.totalorder %s153, %s154
      %p165 = scmp.eq.s32.totalorder %s41, 0
      %p166 = por %p164, %p165
      %p167 = scmp.ne.s32.totalorder %s153, %s154
      %p168 = scmp.eq.s32.totalorder %s42, 1
      %p169 = por %p167, %p168
      %p171 = scmp.ne.s32.totalorder %s154, %s170
      %p172 = scmp.eq.s32.totalorder %s42, 0
      %p173 = por %p171, %p172
      %s174 = ssub.s32 %s36, %s43
      %p175 = scmp.eq.s32.totalorder %s174, 0
      %s177 = sadd.s32 %s176, 1
      %s178 = scalar_select %p175, %s176, %s177
      %p181 = pneg %p175
      %p182 = scmp.eq.s32.totalorder %s36, 1
      %p183 = por %p181, %p182
      %p184 = scmp.ne.s32.totalorder %s176, %s179
      %p185 = scmp.eq.s32.totalorder %s36, 0
      %p186 = por %p184, %p185
      %p187 = scmp.ne.s32.totalorder %s176, %s179
      %p188 = scmp.eq.s32.totalorder %s41, 1
      %p189 = por %p187, %p188
      %p190 = scmp.ne.s32.totalorder %s179, %s180
      %p191 = scmp.eq.s32.totalorder %s41, 0
      %p192 = por %p190, %p191
      %p193 = scmp.ne.s32.totalorder %s179, %s180
      %p194 = scmp.eq.s32.totalorder %s42, 1
      %p195 = por %p193, %p194
      %p197 = scmp.ne.s32.totalorder %s180, %s196
      %p198 = scmp.eq.s32.totalorder %s42, 0
      %p199 = por %p197, %p198
      %s201 = sadd.s32 %s200, 1
      %p204 = scmp.eq.s32.totalorder %s36, 1
      %p205 = scmp.ne.s32.totalorder %s200, %s202
      %p206 = scmp.eq.s32.totalorder %s36, 0
      %p207 = por %p205, %p206
      %p208 = scmp.ne.s32.totalorder %s200, %s202
      %p209 = scmp.eq.s32.totalorder %s41, 1
      %p210 = por %p208, %p209
      %p211 = scmp.ne.s32.totalorder %s202, %s203
      %p212 = scmp.eq.s32.totalorder %s41, 0
      %p213 = por %p211, %p212
      %p214 = scmp.ne.s32.totalorder %s202, %s203
      %p215 = scmp.eq.s32.totalorder %s42, 1
      %p216 = por %p214, %p215
      %p218 = scmp.ne.s32.totalorder %s203, %s217
      %p219 = scmp.eq.s32.totalorder %s42, 0
      %p220 = por %p218, %p219
      %s222 = sadd.s32 %s221, 1
      %p225 = scmp.eq.s32.totalorder %s36, 1
      %p226 = scmp.ne.s32.totalorder %s221, %s223
      %p227 = scmp.eq.s32.totalorder %s36, 0
      %p228 = por %p226, %p227
      %p229 = scmp.ne.s32.totalorder %s221, %s223
      %p230 = scmp.eq.s32.totalorder %s41, 1
      %p231 = por %p229, %p230
      %p232 = scmp.ne.s32.totalorder %s223, %s224
      %p233 = scmp.eq.s32.totalorder %s41, 0
      %p234 = por %p232, %p233
      %p235 = scmp.ne.s32.totalorder %s223, %s224
      %p236 = scmp.eq.s32.totalorder %s42, 1
      %p237 = por %p235, %p236
      %p239 = scmp.ne.s32.totalorder %s224, %s238
      %p240 = scmp.eq.s32.totalorder %s42, 0
      %p241 = por %p239, %p240
      %s243 = sadd.s32 %s242, 1
      %p246 = scmp.eq.s32.totalorder %s36, 1
      %p247 = scmp.ne.s32.totalorder %s242, %s244
      %p248 = scmp.eq.s32.totalorder %s36, 0
      %p249 = por %p247, %p248
      %p250 = scmp.ne.s32.totalorder %s242, %s244
      %p251 = scmp.eq.s32.totalorder %s41, 1
      %p252 = por %p250, %p251
      %p253 = scmp.ne.s32.totalorder %s244, %s245
      %p254 = scmp.eq.s32.totalorder %s41, 0
      %p255 = por %p253, %p254
      %p256 = scmp.ne.s32.totalorder %s244, %s245
      %p257 = scmp.eq.s32.totalorder %s42, 1
      %p258 = por %p256, %p257
      %p260 = scmp.ne.s32.totalorder %s245, %s259
      %p261 = scmp.eq.s32.totalorder %s42, 0
      %p262 = por %p260, %p261
      %s264 = sadd.s32 %s263, 1
      %p267 = scmp.eq.s32.totalorder %s36, 1
      %p268 = scmp.ne.s32.totalorder %s263, %s265
      %p269 = scmp.eq.s32.totalorder %s36, 0
      %p270 = por %p268, %p269
      %p271 = scmp.ne.s32.totalorder %s263, %s265
      %p272 = scmp.eq.s32.totalorder %s41, 1
      %p273 = por %p271, %p272
      %p274 = scmp.ne.s32.totalorder %s265, %s266
      %p275 = scmp.eq.s32.totalorder %s41, 0
      %p276 = por %p274, %p275
      %p277 = scmp.ne.s32.totalorder %s265, %s266
      %p278 = scmp.eq.s32.totalorder %s42, 1
      %p279 = por %p277, %p278
      %p281 = scmp.ne.s32.totalorder %s266, %s280
      %p282 = scmp.eq.s32.totalorder %s42, 0
      %p283 = por %p281, %p282
      %s285 = sadd.s32 %s284, 1
      %p288 = scmp.eq.s32.totalorder %s36, 1
      %p289 = scmp.ne.s32.totalorder %s284, %s286
      %p290 = scmp.eq.s32.totalorder %s36, 0
      %p291 = por %p289, %p290
      %p292 = scmp.ne.s32.totalorder %s284, %s286
      %p293 = scmp.eq.s32.totalorder %s41, 1
      %p294 = por %p292, %p293
      %p295 = scmp.ne.s32.totalorder %s286, %s287
      %p296 = scmp.eq.s32.totalorder %s41, 0
      %p297 = por %p295, %p296
      %p298 = scmp.ne.s32.totalorder %s286, %s287
      %p299 = scmp.eq.s32.totalorder %s42, 1
      %p300 = por %p298, %p299
      %p302 = scmp.ne.s32.totalorder %s287, %s301
      %p303 = scmp.eq.s32.totalorder %s42, 0
      %p304 = por %p302, %p303
      %s306 = sadd.s32 %s305, 1
      %p309 = scmp.eq.s32.totalorder %s36, 1
      %p310 = scmp.ne.s32.totalorder %s305, %s307
      %p311 = scmp.eq.s32.totalorder %s36, 0
      %p312 = por %p310, %p311
      %p313 = scmp.ne.s32.totalorder %s305, %s307
      %p314 = scmp.eq.s32.totalorder %s41, 1
      %p315 = por %p313, %p314
      %p316 = scmp.ne.s32.totalorder %s307, %s308
      %p317 = scmp.eq.s32.totalorder %s41, 0
      %p318 = por %p316, %p317
      %p319 = scmp.ne.s32.totalorder %s307, %s308
      %p320 = scmp.eq.s32.totalorder %s42, 1
      %p321 = por %p319, %p320
      %p323 = scmp.ne.s32.totalorder %s308, %s322
      %p324 = scmp.eq.s32.totalorder %s42, 0
      %p325 = por %p323, %p324
      %s327 = sadd.s32 %s326, 1
      %p330 = scmp.eq.s32.totalorder %s36, 1
      %p331 = scmp.ne.s32.totalorder %s326, %s328
      %p332 = scmp.eq.s32.totalorder %s36, 0
      %p333 = por %p331, %p332
      %p334 = scmp.ne.s32.totalorder %s326, %s328
      %p335 = scmp.eq.s32.totalorder %s41, 1
      %p336 = por %p334, %p335
      %p337 = scmp.ne.s32.totalorder %s328, %s329
      %p338 = scmp.eq.s32.totalorder %s41, 0
      %p339 = por %p337, %p338
      %p340 = scmp.ne.s32.totalorder %s328, %s329
      %p341 = scmp.eq.s32.totalorder %s42, 1
      %p342 = por %p340, %p341
      %p344 = scmp.ne.s32.totalorder %s329, %s343
      %p345 = scmp.eq.s32.totalorder %s42, 0
      %p346 = por %p344, %p345
      %s348 = sadd.s32 %s347, 1
      %p351 = scmp.eq.s32.totalorder %s36, 1
      %p352 = scmp.ne.s32.totalorder %s347, %s349
      %p353 = scmp.eq.s32.totalorder %s36, 0
      %p354 = por %p352, %p353
      %p355 = scmp.ne.s32.totalorder %s347, %s349
      %p356 = scmp.eq.s32.totalorder %s41, 1
      %p357 = por %p355, %p356
      %p358 = scmp.ne.s32.totalorder %s349, %s350
      %p359 = scmp.eq.s32.totalorder %s41, 0
      %p360 = por %p358, %p359
      %p361 = scmp.ne.s32.totalorder %s349, %s350
      %p362 = scmp.eq.s32.totalorder %s42, 1
      %p363 = por %p361, %p362
      %p365 = scmp.ne.s32.totalorder %s350, %s364
      %p366 = scmp.eq.s32.totalorder %s42, 0
      %p367 = por %p365, %p366
      %s369 = sadd.s32 %s368, 1
      %p372 = scmp.eq.s32.totalorder %s36, 1
      %p373 = scmp.ne.s32.totalorder %s368, %s370
      %p374 = scmp.eq.s32.totalorder %s36, 0
      %p375 = por %p373, %p374
      %p376 = scmp.ne.s32.totalorder %s368, %s370
      %p377 = scmp.eq.s32.totalorder %s41, 1
      %p378 = por %p376, %p377
      %p379 = scmp.ne.s32.totalorder %s370, %s371
      %p380 = scmp.eq.s32.totalorder %s41, 0
      %p381 = por %p379, %p380
      %p382 = scmp.ne.s32.totalorder %s370, %s371
      %p383 = scmp.eq.s32.totalorder %s42, 1
      %p384 = por %p382, %p383
      %p386 = scmp.ne.s32.totalorder %s371, %s385
      %p387 = scmp.eq.s32.totalorder %s42, 0
      %p388 = por %p386, %p387
      %s390 = sadd.s32 %s389, 1
      %p393 = scmp.eq.s32.totalorder %s36, 1
      %p394 = scmp.ne.s32.totalorder %s389, %s391
      %p395 = scmp.eq.s32.totalorder %s36, 0
      %p396 = por %p394, %p395
      %p397 = scmp.ne.s32.totalorder %s389, %s391
      %p398 = scmp.eq.s32.totalorder %s41, 1
      %p399 = por %p397, %p398
      %p400 = scmp.ne.s32.totalorder %s391, %s392
      %p401 = scmp.eq.s32.totalorder %s41, 0
      %p402 = por %p400, %p401
      %p403 = scmp.ne.s32.totalorder %s391, %s392
      %p404 = scmp.eq.s32.totalorder %s42, 1
      %p405 = por %p403, %p404
      %p407 = scmp.ne.s32.totalorder %s392, %s406
      %p408 = scmp.eq.s32.totalorder %s42, 0
      %p409 = por %p407, %p408
      %s411 = sadd.s32 %s410, 1
      %p414 = scmp.eq.s32.totalorder %s36, 1
      %p415 = scmp.ne.s32.totalorder %s410, %s412
      %p416 = scmp.eq.s32.totalorder %s36, 0
      %p417 = por %p415, %p416
      %p418 = scmp.ne.s32.totalorder %s410, %s412
      %p419 = scmp.eq.s32.totalorder %s41, 1
      %p420 = por %p418, %p419
      %p421 = scmp.ne.s32.totalorder %s412, %s413
      %p422 = scmp.eq.s32.totalorder %s41, 0
      %p423 = por %p421, %p422
      %p424 = scmp.ne.s32.totalorder %s412, %s413
      %p425 = scmp.eq.s32.totalorder %s42, 1
      %p426 = por %p424, %p425
      %p428 = scmp.ne.s32.totalorder %s413, %s427
      %p429 = scmp.eq.s32.totalorder %s42, 0
      %p430 = por %p428, %p429
      %s432 = sadd.s32 %s431, 1
      %p435 = scmp.eq.s32.totalorder %s36, 1
      %p436 = scmp.ne.s32.totalorder %s431, %s433
      %p437 = scmp.eq.s32.totalorder %s36, 0
      %p438 = por %p436, %p437
      %p439 = scmp.ne.s32.totalorder %s431, %s433
      %p440 = scmp.eq.s32.totalorder %s41, 1
      %p441 = por %p439, %p440
      %p442 = scmp.ne.s32.totalorder %s433, %s434
      %p443 = scmp.eq.s32.totalorder %s41, 0
      %p444 = por %p442, %p443
      %p445 = scmp.ne.s32.totalorder %s433, %s434
      %p446 = scmp.eq.s32.totalorder %s42, 1
      %p447 = por %p445, %p446
      %p449 = scmp.ne.s32.totalorder %s434, %s448
      %p450 = scmp.eq.s32.totalorder %s42, 0
      %p451 = por %p449, %p450
      %s452 = ssub.s32 %s36, %s43
      %p453 = scmp.eq.s32.totalorder %s452, 0
      %s455 = sadd.s32 %s454, 1
      %s456 = scalar_select %p453, %s454, %s455
      %p459 = pneg %p453
      %p460 = scmp.eq.s32.totalorder %s36, 1
      %p461 = por %p459, %p460
      %p462 = scmp.ne.s32.totalorder %s454, %s457
      %p463 = scmp.eq.s32.totalorder %s36, 0
      %p464 = por %p462, %p463
      %p465 = scmp.ne.s32.totalorder %s454, %s457
      %p466 = scmp.eq.s32.totalorder %s41, 1
      %p467 = por %p465, %p466
      %p468 = scmp.ne.s32.totalorder %s457, %s458
      %p469 = scmp.eq.s32.totalorder %s41, 0
      %p470 = por %p468, %p469
      %p471 = scmp.ne.s32.totalorder %s457, %s458
      %p472 = scmp.eq.s32.totalorder %s42, 1
      %p473 = por %p471, %p472
      %p475 = scmp.ne.s32.totalorder %s458, %s474
      %p476 = scmp.eq.s32.totalorder %s42, 0
      %p477 = por %p475, %p476
      %s478 = ssub.s32 %s36, %s43
      %p479 = scmp.eq.s32.totalorder %s478, 0
      %s481 = sadd.s32 %s480, 1
      %s482 = scalar_select %p479, %s480, %s481
      %p485 = pneg %p479
      %p486 = scmp.eq.s32.totalorder %s36, 1
      %p487 = por %p485, %p486
      %p488 = scmp.ne.s32.totalorder %s480, %s483
      %p489 = scmp.eq.s32.totalorder %s36, 0
      %p490 = por %p488, %p489
      %p491 = scmp.ne.s32.totalorder %s480, %s483
      %p492 = scmp.eq.s32.totalorder %s41, 1
      %p493 = por %p491, %p492
      %p494 = scmp.ne.s32.totalorder %s483, %s484
      %p495 = scmp.eq.s32.totalorder %s41, 0
      %p496 = por %p494, %p495
      %p497 = scmp.ne.s32.totalorder %s483, %s484
      %p498 = scmp.eq.s32.totalorder %s42, 1
      %p499 = por %p497, %p498
      %p501 = scmp.ne.s32.totalorder %s484, %s500
      %p502 = scmp.eq.s32.totalorder %s42, 0
      %p503 = por %p501, %p502
      %p504 = scmp.le.s32.totalorder 1, %s36
      %p505 = scmp.lt.s32.totalorder %s36, 3
      %p506 = pnand %p504, %p505
      %p507 = pneg %p506
      // Predicated region
      $region9: #{tpu_custom_call.1} parent=5 // pred_check
        _
      $region10: #{tpu_custom_call.1} parent=5 // pred_check_branch
        %509 = sbr.rel (%p506) target = $region12
      $region11: #{tpu_custom_call.1} parent=5 // pred_region
        %s510 = ssub.s32 %s36, 1
        // Predicated region
        $region13: #{tpu_custom_call.1} parent=11 // pred_check
          %p511 = pneg %p213
        $region14: #{tpu_custom_call.1} parent=11 // pred_check_branch
          %513 = sbr.rel (%p511) target = $region16
        $region15: #{tpu_custom_call.1} parent=11 // pred_region
          %515 = vsyncadd [#allocation3], 0
          %s516 = sshll.u32 %s6, 4
          %s517 = int_to_ptr.hbm [resolvable:$true] %s516
          %s518 = sshll.u32 [#allocation2], 4
          %s519 = int_to_ptr.vmem [resolvable:$true] %s518
          %524 = dma.hbm_to_vmem [thread:$0]  %s517, 512, %s519, [#allocation3], 128, 128, 8
        $region16: #{tpu_custom_call.1} parent=11 // pred_fallthru
          _
        // Predicated region
        $region17: #{tpu_custom_call.1} parent=11 // pred_check
          %p525 = pneg %p234
        $region18: #{tpu_custom_call.1} parent=11 // pred_check_branch
          %527 = sbr.rel (%p525) target = $region20
        $region19: #{tpu_custom_call.1} parent=11 // pred_region
          _
        $region20: #{tpu_custom_call.1} parent=11 // pred_fallthru
          _
        // Predicated region
        $region21: #{tpu_custom_call.1} parent=11 // pred_check
          %p528 = pneg %p255
        $region22: #{tpu_custom_call.1} parent=11 // pred_check_branch
          %530 = sbr.rel (%p528) target = $region24
        $region23: #{tpu_custom_call.1} parent=11 // pred_region
          %532 = vsyncadd [#allocation6], 0
          %s533 = sshll.u32 %s8, 4
          %s534 = int_to_ptr.hbm [resolvable:$true] %s533
          %s535 = sshll.u32 [#allocation5], 4
          %s536 = int_to_ptr.vmem [resolvable:$true] %s535
          %541 = dma.hbm_to_vmem [thread:$0]  %s534, 512, %s536, [#allocation6], 128, 128, 8
        $region24: #{tpu_custom_call.1} parent=11 // pred_fallthru
          _
        // Predicated region
        $region25: #{tpu_custom_call.1} parent=11 // pred_check
          %p542 = pneg %p276
        $region26: #{tpu_custom_call.1} parent=11 // pred_check_branch
          %544 = sbr.rel (%p542) target = $region28
        $region27: #{tpu_custom_call.1} parent=11 // pred_region
          _
        $region28: #{tpu_custom_call.1} parent=11 // pred_fallthru
          _
        // Predicated region
        $region29: #{tpu_custom_call.1} parent=11 // pred_check
          %p545 = pneg %p297
        $region30: #{tpu_custom_call.1} parent=11 // pred_check_branch
          %547 = sbr.rel (%p545) target = $region32
        $region31: #{tpu_custom_call.1} parent=11 // pred_region
          %549 = vsyncadd [#allocation6], 0
          %s550 = sshll.u32 %s10, 4
          %s551 = int_to_ptr.hbm [resolvable:$true] %s550
          %s552 = sshll.u32 [#allocation7], 4
          %s553 = int_to_ptr.vmem [resolvable:$true] %s552
          %558 = dma.hbm_to_vmem [thread:$0]  %s551, 512, %s553, [#allocation6], 128, 128, 8
        $region32: #{tpu_custom_call.1} parent=11 // pred_fallthru
          _
        // Predicated region
        $region33: #{tpu_custom_call.1} parent=11 // pred_check
          %p559 = pneg %p318
        $region34: #{tpu_custom_call.1} parent=11 // pred_check_branch
          %561 = sbr.rel (%p559) target = $region36
        $region35: #{tpu_custom_call.1} parent=11 // pred_region
          _
        $region36: #{tpu_custom_call.1} parent=11 // pred_fallthru
          _
        // Predicated region
        $region37: #{tpu_custom_call.1} parent=11 // pred_check
          %p562 = pneg %p339
        $region38: #{tpu_custom_call.1} parent=11 // pred_check_branch
          %564 = sbr.rel (%p562) target = $region40
        $region39: #{tpu_custom_call.1} parent=11 // pred_region
          %566 = vsyncadd [#allocation9], 0
          %s567 = sshll.u32 %s12, 4
          %s568 = int_to_ptr.hbm [resolvable:$true] %s567
          %s569 = sshll.u32 [#allocation8], 4
          %s570 = int_to_ptr.vmem [resolvable:$true] %s569
          %575 = dma.hbm_to_vmem [thread:$0]  %s568, 512, %s570, [#allocation9], 128, 128, 8
        $region40: #{tpu_custom_call.1} parent=11 // pred_fallthru
          _
        // Predicated region
        $region41: #{tpu_custom_call.1} parent=11 // pred_check
          %p576 = pneg %p360
        $region42: #{tpu_custom_call.1} parent=11 // pred_check_branch
          %578 = sbr.rel (%p576) target = $region44
        $region43: #{tpu_custom_call.1} parent=11 // pred_region
          _
        $region44: #{tpu_custom_call.1} parent=11 // pred_fallthru
          _
        // Predicated region
        $region45: #{tpu_custom_call.1} parent=11 // pred_check
          %p579 = pneg %p381
        $region46: #{tpu_custom_call.1} parent=11 // pred_check_branch
          %581 = sbr.rel (%p579) target = $region48
        $region47: #{tpu_custom_call.1} parent=11 // pred_region
          %583 = vsyncadd [#allocation9], 0
          %s584 = sshll.u32 %s14, 4
          %s585 = int_to_ptr.hbm [resolvable:$true] %s584
          %s586 = sshll.u32 [#allocation10], 4
          %s587 = int_to_ptr.vmem [resolvable:$true] %s586
          %592 = dma.hbm_to_vmem [thread:$0]  %s585, 512, %s587, [#allocation9], 128, 128, 8
        $region48: #{tpu_custom_call.1} parent=11 // pred_fallthru
          _
        // Predicated region
        $region49: #{tpu_custom_call.1} parent=11 // pred_check
          %p593 = pneg %p402
        $region50: #{tpu_custom_call.1} parent=11 // pred_check_branch
          %595 = sbr.rel (%p593) target = $region52
        $region51: #{tpu_custom_call.1} parent=11 // pred_region
          _
        $region52: #{tpu_custom_call.1} parent=11 // pred_fallthru
          _
        // Predicated region
        $region53: #{tpu_custom_call.1} parent=11 // pred_check
          %p596 = pneg %p423
        $region54: #{tpu_custom_call.1} parent=11 // pred_check_branch
          %598 = sbr.rel (%p596) target = $region56
        $region55: #{tpu_custom_call.1} parent=11 // pred_region
          %600 = vsyncadd [#allocation12], 0
          %s601 = sshll.u32 %s16, 4
          %s602 = int_to_ptr.hbm [resolvable:$true] %s601
          %s603 = sshll.u32 [#allocation11], 4
          %s604 = int_to_ptr.vmem [resolvable:$true] %s603
          %609 = dma.hbm_to_vmem [thread:$0]  %s602, 512, %s604, [#allocation12], 128, 128, 8
        $region56: #{tpu_custom_call.1} parent=11 // pred_fallthru
          _
        // Predicated region
        $region57: #{tpu_custom_call.1} parent=11 // pred_check
          %p610 = pneg %p444
        $region58: #{tpu_custom_call.1} parent=11 // pred_check_branch
          %612 = sbr.rel (%p610) target = $region60
        $region59: #{tpu_custom_call.1} parent=11 // pred_region
          _
        $region60: #{tpu_custom_call.1} parent=11 // pred_fallthru
          _
      $region12: #{tpu_custom_call.1} parent=5 // pred_fallthru
        _
      %p613 = scmp.lt.s32.totalorder %s36, 2
      // Predicated region
      $region61: #{tpu_custom_call.1} parent=5 // pred_check
        %p614 = pneg %p613
      $region62: #{tpu_custom_call.1} parent=5 // pred_check_branch
        %616 = sbr.rel (%p614) target = $region64
      $region63: #{tpu_custom_call.1} parent=5 // pred_region
        // Predicated region
        $region65: #{tpu_custom_call.1} parent=63 // pred_check
          %p617 = pneg %p56
        $region66: #{tpu_custom_call.1} parent=63 // pred_check_branch
          %619 = sbr.rel (%p617) target = $region68
        $region67: #{tpu_custom_call.1} parent=63 // pred_region
          %p620 = scmp.lt.s32.totalorder %s36, 1
          %s621 = scalar_select %p620, %s36, 1
          %s622 = smul.addr %s621, 2
          %s623 = smul.addr %s622, 8
          %s624 = scalar_lea.vmem %s0, %s623
        $region68: #{tpu_custom_call.1} parent=63 // pred_fallthru
          _
        // Predicated region
        $region69: #{tpu_custom_call.1} parent=63 // pred_check
          %p625 = pneg %p82
        $region70: #{tpu_custom_call.1} parent=63 // pred_check_branch
          %627 = sbr.rel (%p625) target = $region72
        $region71: #{tpu_custom_call.1} parent=63 // pred_region
          %p628 = scmp.lt.s32.totalorder %s36, 1
          %s629 = scalar_select %p628, %s36, 1
          %s630 = smul.addr %s629, 8
          %s631 = scalar_lea.vmem %s1, %s630
        $region72: #{tpu_custom_call.1} parent=63 // pred_fallthru
          _
        // Predicated region
        $region73: #{tpu_custom_call.1} parent=63 // pred_check
          %p632 = pneg %p108
        $region74: #{tpu_custom_call.1} parent=63 // pred_check_branch
          %634 = sbr.rel (%p632) target = $region76
        $region75: #{tpu_custom_call.1} parent=63 // pred_region
          %p635 = scmp.lt.s32.totalorder %s36, 1
          %s636 = scalar_select %p635, %s36, 1
          %s637 = smul.addr %s636, 2
          %s638 = smul.addr %s637, 8
          %s639 = scalar_lea.vmem %s2, %s638
        $region76: #{tpu_custom_call.1} parent=63 // pred_fallthru
          _
        // Predicated region
        $region77: #{tpu_custom_call.1} parent=63 // pred_check
          %p640 = pneg %p134
        $region78: #{tpu_custom_call.1} parent=63 // pred_check_branch
          %642 = sbr.rel (%p640) target = $region80
        $region79: #{tpu_custom_call.1} parent=63 // pred_region
          %p643 = scmp.lt.s32.totalorder %s36, 1
          %s644 = scalar_select %p643, %s36, 1
          %s645 = smul.addr %s644, 8
          %s646 = scalar_lea.vmem %s3, %s645
        $region80: #{tpu_custom_call.1} parent=63 // pred_fallthru
          _
        // Predicated region
        $region81: #{tpu_custom_call.1} parent=63 // pred_check
          %p647 = pneg %p160
        $region82: #{tpu_custom_call.1} parent=63 // pred_check_branch
          %649 = sbr.rel (%p647) target = $region84
        $region83: #{tpu_custom_call.1} parent=63 // pred_region
          %p650 = scmp.lt.s32.totalorder %s36, 1
          %s651 = scalar_select %p650, %s36, 1
          %s652 = scalar_lea.vmem %s4, %s651
        $region84: #{tpu_custom_call.1} parent=63 // pred_fallthru
          _
        // Predicated region
        $region85: #{tpu_custom_call.1} parent=63 // pred_check
          %p653 = pneg %p186
        $region86: #{tpu_custom_call.1} parent=63 // pred_check_branch
          %655 = sbr.rel (%p653) target = $region88
        $region87: #{tpu_custom_call.1} parent=63 // pred_region
          %p656 = scmp.lt.s32.totalorder %s36, 1
          %s657 = scalar_select %p656, %s36, 1
          %s658 = scalar_lea.vmem %s5, %s657
        $region88: #{tpu_custom_call.1} parent=63 // pred_fallthru
          _
      $region64: #{tpu_custom_call.1} parent=5 // pred_fallthru
        _
      %p659 = scmp.le.s32.totalorder 1, %s36
      %p660 = scmp.lt.s32.totalorder %s36, 3
      %p661 = pnand %p659, %p660
      %p662 = pneg %p661
      // Predicated region
      $region89: #{tpu_custom_call.1} parent=5 // pred_check
        _
      $region90: #{tpu_custom_call.1} parent=5 // pred_check_branch
        %664 = sbr.rel (%p661) target = $region92
      $region91: #{tpu_custom_call.1} parent=5 // pred_region
        %s665 = ssub.s32 %s36, 1
        // Predicated region
        $region93: #{tpu_custom_call.1} parent=91 // pred_check
          %p666 = pneg %p213
        $region94: #{tpu_custom_call.1} parent=91 // pred_check_branch
          %668 = sbr.rel (%p666) target = $region96
        $region95: #{tpu_custom_call.1} parent=91 // pred_region
          %670 = dma.done [#allocation3], 512
        $region96: #{tpu_custom_call.1} parent=91 // pred_fallthru
          _
        // Predicated region
        $region97: #{tpu_custom_call.1} parent=91 // pred_check
          %p671 = pneg %p255
        $region98: #{tpu_custom_call.1} parent=91 // pred_check_branch
          %673 = sbr.rel (%p671) target = $region100
        $region99: #{tpu_custom_call.1} parent=91 // pred_region
          %675 = dma.done [#allocation6], 512
        $region100: #{tpu_custom_call.1} parent=91 // pred_fallthru
          _
        // Predicated region
        $region101: #{tpu_custom_call.1} parent=91 // pred_check
          %p676 = pneg %p297
        $region102: #{tpu_custom_call.1} parent=91 // pred_check_branch
          %678 = sbr.rel (%p676) target = $region104
        $region103: #{tpu_custom_call.1} parent=91 // pred_region
          %680 = dma.done [#allocation6], 512
        $region104: #{tpu_custom_call.1} parent=91 // pred_fallthru
          _
        // Predicated region
        $region105: #{tpu_custom_call.1} parent=91 // pred_check
          %p681 = pneg %p339
        $region106: #{tpu_custom_call.1} parent=91 // pred_check_branch
          %683 = sbr.rel (%p681) target = $region108
        $region107: #{tpu_custom_call.1} parent=91 // pred_region
          %685 = dma.done [#allocation9], 512
        $region108: #{tpu_custom_call.1} parent=91 // pred_fallthru
          _
        // Predicated region
        $region109: #{tpu_custom_call.1} parent=91 // pred_check
          %p686 = pneg %p381
        $region110: #{tpu_custom_call.1} parent=91 // pred_check_branch
          %688 = sbr.rel (%p686) target = $region112
        $region111: #{tpu_custom_call.1} parent=91 // pred_region
          %690 = dma.done [#allocation9], 512
        $region112: #{tpu_custom_call.1} parent=91 // pred_fallthru
          _
        // Predicated region
        $region113: #{tpu_custom_call.1} parent=91 // pred_check
          %p691 = pneg %p423
        $region114: #{tpu_custom_call.1} parent=91 // pred_check_branch
          %693 = sbr.rel (%p691) target = $region116
        $region115: #{tpu_custom_call.1} parent=91 // pred_region
          %695 = dma.done [#allocation12], 512
        $region116: #{tpu_custom_call.1} parent=91 // pred_fallthru
          _
        %p696 = scmp.lt.s32.totalorder %s41, 1
        %s697 = scalar_select %p696, %s41, 1
        %s698 = smul.addr %s697, 2
        %s699 = smul.addr %s698, 8
        %s700 = scalar_lea.vmem %s0, %s699
        %p701 = pneg %p62
        %p702 = pneg %p59
        %p703 = scmp.lt.s32.totalorder %s41, 1
        %s704 = scalar_select %p703, %s41, 1
        %s705 = smul.addr %s704, 8
        %s706 = scalar_lea.vmem %s1, %s705
        %p707 = pneg %p88
        %p708 = pneg %p85
        %p709 = scmp.lt.s32.totalorder %s41, 1
        %s710 = scalar_select %p709, %s41, 1
        %s711 = smul.addr %s710, 2
        %s712 = smul.addr %s711, 8
        %s713 = scalar_lea.vmem %s2, %s712
        %p714 = pneg %p114
        %p715 = pneg %p111
        %p716 = scmp.lt.s32.totalorder %s41, 1
        %s717 = scalar_select %p716, %s41, 1
        %s718 = smul.addr %s717, 8
        %s719 = scalar_lea.vmem %s3, %s718
        %p720 = pneg %p140
        %p721 = pneg %p137
        %p722 = scmp.lt.s32.totalorder %s41, 1
        %s723 = scalar_select %p722, %s41, 1
        %s724 = scalar_lea.vmem %s4, %s723
        %p725 = pneg %p166
        %p726 = pneg %p163
        %p727 = scmp.lt.s32.totalorder %s41, 1
        %s728 = scalar_select %p727, %s41, 1
        %s729 = scalar_lea.vmem %s5, %s728
        %p730 = pneg %p192
        %p731 = pneg %p189
        %p732 = pneg %p213
        %p733 = pneg %p210
        %p734 = pneg %p234
        %p735 = pneg %p231
        %p736 = pneg %p255
        %p737 = pneg %p252
        %p738 = pneg %p276
        %p739 = pneg %p273
        %p740 = pneg %p297
        %p741 = pneg %p294
        %p742 = pneg %p318
        %p743 = pneg %p315
        %p744 = pneg %p339
        %p745 = pneg %p336
        %p746 = pneg %p360
        %p747 = pneg %p357
        %p748 = pneg %p381
        %p749 = pneg %p378
        %p750 = pneg %p402
        %p751 = pneg %p399
        %p752 = pneg %p423
        %p753 = pneg %p420
        %p754 = pneg %p444
        %p755 = pneg %p441
        %p756 = pneg %p470
        %p757 = pneg %p467
        %s758 = sand.u32 %s457, 1
        %s759 = scalar_lea.sflag [#allocation4], %s758
        %s760 = sand.u32 %s457, 1
        %s761 = smul.addr %s760, 16
        %s762 = scalar_lea.vmem [#allocation13], %s761
        %p763 = pneg %p496
        %p764 = pneg %p493
        %s765 = sand.u32 %s483, 1
        %s766 = scalar_lea.sflag [#allocation15], %s765
        %s767 = sand.u32 %s483, 1
        %s768 = smul.addr %s767, 8
        %s769 = scalar_lea.vmem [#allocation14], %s768
        %p770 = scmp.lt.s32.totalorder %s41, 1
        %s771 = scalar_select %p770, %s41, 1
        %s772 = smul.addr %s771, 2
        %s773 = smul.addr %s772, 8
        %s774 = scalar_lea.vmem %s0, %s773
        %p775 = scmp.lt.s32.totalorder %s41, 1
        %s776 = scalar_select %p775, %s41, 1
        %s777 = smul.addr %s776, 8
        %s778 = scalar_lea.vmem %s1, %s777
        %p779 = scmp.lt.s32.totalorder %s41, 1
        %s780 = scalar_select %p779, %s41, 1
        %s781 = smul.addr %s780, 2
        %s782 = smul.addr %s781, 8
        %s783 = scalar_lea.vmem %s2, %s782
        %p784 = scmp.lt.s32.totalorder %s41, 1
        %s785 = scalar_select %p784, %s41, 1
        %s786 = smul.addr %s785, 8
        %s787 = scalar_lea.vmem %s3, %s786
        %p788 = scmp.lt.s32.totalorder %s41, 1
        %s789 = scalar_select %p788, %s41, 1
        %s790 = scalar_lea.vmem %s4, %s789
        %p791 = scmp.lt.s32.totalorder %s41, 1
        %s792 = scalar_select %p791, %s41, 1
        %s793 = scalar_lea.vmem %s5, %s792
        %v794 = vld [vmem:[%s774] sm:$0xff]
        %v795 = vld [vmem:[%s774 + $0x8] sm:$0xff]
        %v796 = vld [vmem:[%s778] sm:$0xff]
        %v797 = vld [vmem:[%s783] sm:$0xff]
        %v798 = vld [vmem:[%s783 + $0x8] sm:$0xff]
        %v799 = vld [vmem:[%s787] sm:$0xff]
        %v800 = vld [vmem:[%s790] sm:$0x1]
        %v801 = vld [vmem:[%s793] sm:$0x1]
        %803 = vset.pattern.permute.xlu0 0
        %804 = vperm.xlu0 %803, %v797
        %v805 = vpop.permute.xlu0 %804
        %808 = vset.pattern.permute.xlu0 0
        %809 = vperm.xlu0 %808, %v798
        %v810 = vpop.permute.xlu0 %809
        %v812 = vmul.f32 %v794, %v805
        %v813 = vmul.f32 %v795, %v810
        %vm814 = vcmask 261120
        %v815 = vsel %vm814, %v812, 0.0
        %v816 = vsel %vm814, %v813, 0.0
        %v817 = vadd.f32 %v815, %v816
        %v818 = vrot.slane %v817, 4
        %v819 = vadd.f32 %v817, %v818
        %v820 = vrot.slane %v819, 2
        %v821 = vadd.f32 %v819, %v820
        %v822 = vrot.slane %v821, 1
        %v823 = vadd.f32 %v821, %v822
        %vm824 = vcmask 7168
        %v825 = vsel %vm824, %v797, 0.0
        %v826 = vsel %vm824, %v798, 0.0
        %v827 = vadd.f32 %v825, %v826
        %828 = vadd.xlane.f32.xlu0 %v827
        %v829 = vpop.xlane.xlu0 %828
        %v830 = vrot.slane %v829, 4
        %v831 = vadd.f32 %v829, %v830
        %v832 = vrot.slane %v831, 2
        %v833 = vadd.f32 %v831, %v832
        %v834 = vrot.slane %v833, 1
        %v835 = vadd.f32 %v833, %v834
        %s836 = vtos %v835
        %v837 = vstv %s836
        %v838 = vrcp.pop %v837
        %v839 = vmul.f32 %v837, %v838
        %v840 = vsub.f32 1.0, %v839
        %v841 = vmul.f32 %v838, %v840
        %v842 = vadd.f32 %v838, %v841
        %vm843 = vweird.f32 %v837
        %vm844 = vweird.f32 %v838
        %vm845 = vmor %vm843, %vm844
        %v846 = vsel %vm845, %v838, %v842
        %v847 = vand.u32 2147483647, %v837
        %vm848 = vcmp.eq.f32.partialorder %v847, 8.507059e+37
        %v849 = vand.u32 %v837, 2147483648
        %v850 = vor.u32 1.1754944e-38, %v849
        %v851 = vsel %vm848, %v850, %v846
        %v852 = vmul.f32 %v823, %v851
        %854 = vset.pattern.permute.xlu0 0
        %855 = vperm.xlu0 %854, %v799
        %v856 = vpop.permute.xlu0 %855
        %v858 = vmul.f32 %v796, %v856
        %v859 = vsel %vm814, %v858, 0.0
        %v860 = vrot.slane %v859, 4
        %v861 = vadd.f32 %v859, %v860
        %v862 = vrot.slane %v861, 2
        %v863 = vadd.f32 %v861, %v862
        %v864 = vrot.slane %v863, 1
        %v865 = vadd.f32 %v863, %v864
        %v866 = vsel %vm824, %v799, 0.0
        %867 = vadd.xlane.f32.xlu0 %v866
        %v868 = vpop.xlane.xlu0 %867
        %v869 = vrot.slane %v868, 4
        %v870 = vadd.f32 %v868, %v869
        %v871 = vrot.slane %v870, 2
        %v872 = vadd.f32 %v870, %v871
        %v873 = vrot.slane %v872, 1
        %v874 = vadd.f32 %v872, %v873
        %s875 = vtos %v874
        %v876 = vstv %s875
        %v877 = vrcp.pop %v876
        %v878 = vmul.f32 %v876, %v877
        %v879 = vsub.f32 1.0, %v878
        %v880 = vmul.f32 %v877, %v879
        %v881 = vadd.f32 %v877, %v880
        %vm882 = vweird.f32 %v876
        %vm883 = vweird.f32 %v877
        %vm884 = vmor %vm882, %vm883
        %v885 = vsel %vm884, %v877, %v881
        %v886 = vand.u32 2147483647, %v876
        %vm887 = vcmp.eq.f32.partialorder %v886, 8.507059e+37
        %v888 = vand.u32 %v876, 2147483648
        %v889 = vor.u32 1.1754944e-38, %v888
        %v890 = vsel %vm887, %v889, %v885
        %v891 = vmul.f32 %v865, %v890
        %v892 = vmax.f32 %v852, 0.0
        %v893 = vld [vmem:[#allocation2] sm:$0xff]
        %v894 = vld [vmem:[#allocation2 + $0x8] sm:$0xff]
        %v895 = vld [vmem:[#allocation2 + $0x10] sm:$0xff]
        %v896 = vld [vmem:[#allocation2 + $0x18] sm:$0xff]
        %v897 = vld [vmem:[%s7] sm:$0x1]
        %v899 = vsel %vm814, %v892, 0
        %901 = vmatpush.msra.mxu0 0.0
        %902 = vmatpush.msra.mxu0 0.0
        %903 = vmatpush.msra.mxu0 0.0
        %904 = vmatpush.msra.mxu0 0.0
        %905 = vmatpush.msra.mxu0 0.0
        %906 = vmatpush.msra.mxu0 0.0
        %907 = vmatpush.msra.mxu0 0.0
        %908 = vmatpush.msra.mxu0 0.0
        %909 = vmatpush.msra.mxu0 0.0
        %910 = vmatpush.msra.mxu0 0.0
        %911 = vmatpush.msra.mxu0 0.0
        %912 = vmatpush.msra.mxu0 0.0
        %913 = vmatpush.msra.mxu0 %v896
        %914 = vmatpush.msra.mxu0 %v895
        %915 = vmatpush.msra.mxu0 %v894
        %916 = vmatpush.msra.mxu0 %v893
        %917 = vmatmul.f32.gmra.mxu0 %v899
        %v918 = vpop.f32.mrf.mxu0
        %v919 = vadd.f32 %v897, %v918
        %920 = vdwg.mxu0
        %v921 = vxor.u32 %v919, 2147483648
        %v922 = vmul.f32 %v921, 1.442695
        %v923 = vpow.pop %v922
        %v924 = vadd.f32 %v923, 1.0
        %v925 = vrcp.pop %v924
        %v926 = vmul.f32 %v924, %v925
        %v927 = vsub.f32 1.0, %v926
        %v928 = vmul.f32 %v925, %v927
        %v929 = vadd.f32 %v925, %v928
        %vm930 = vweird.f32 %v924
        %vm931 = vweird.f32 %v925
        %vm932 = vmor %vm930, %vm931
        %v933 = vsel %vm932, %v925, %v929
        %v934 = vand.u32 2147483647, %v924
        %vm935 = vcmp.eq.f32.partialorder %v934, 8.507059e+37
        %v936 = vand.u32 %v924, 2147483648
        %v937 = vor.u32 1.1754944e-38, %v936
        %v938 = vsel %vm935, %v937, %v933
        %v939 = vmul.f32 1.0, %v938
        %v940 = vmax.f32 %v891, 0.0
        %v941 = vld [vmem:[#allocation5] sm:$0xff]
        %v942 = vld [vmem:[#allocation5 + $0x8] sm:$0xff]
        %v943 = vld [vmem:[#allocation5 + $0x10] sm:$0xff]
        %v944 = vld [vmem:[#allocation5 + $0x18] sm:$0xff]
        %v945 = vld [vmem:[%s9] sm:$0x1]
        %v947 = vsel %vm814, %v940, 0
        %949 = vmatpush.msra.mxu0 0.0
        %950 = vmatpush.msra.mxu0 0.0
        %951 = vmatpush.msra.mxu0 0.0
        %952 = vmatpush.msra.mxu0 0.0
        %953 = vmatpush.msra.mxu0 0.0
        %954 = vmatpush.msra.mxu0 0.0
        %955 = vmatpush.msra.mxu0 0.0
        %956 = vmatpush.msra.mxu0 0.0
        %957 = vmatpush.msra.mxu0 0.0
        %958 = vmatpush.msra.mxu0 0.0
        %959 = vmatpush.msra.mxu0 0.0
        %960 = vmatpush.msra.mxu0 0.0
        %961 = vmatpush.msra.mxu0 %v944
        %962 = vmatpush.msra.mxu0 %v943
        %963 = vmatpush.msra.mxu0 %v942
        %964 = vmatpush.msra.mxu0 %v941
        %965 = vmatmul.f32.gmra.mxu0 %v947
        %v966 = vpop.f32.mrf.mxu0
        %v967 = vadd.f32 %v945, %v966
        %968 = vdwg.mxu0
        %v969 = vxor.u32 %v967, 2147483648
        %v970 = vmul.f32 %v969, 1.442695
        %v971 = vpow.pop %v970
        %v972 = vadd.f32 %v971, 1.0
        %v973 = vrcp.pop %v972
        %v974 = vmul.f32 %v972, %v973
        %v975 = vsub.f32 1.0, %v974
        %v976 = vmul.f32 %v973, %v975
        %v977 = vadd.f32 %v973, %v976
        %vm978 = vweird.f32 %v972
        %vm979 = vweird.f32 %v973
        %vm980 = vmor %vm978, %vm979
        %v981 = vsel %vm980, %v973, %v977
        %v982 = vand.u32 2147483647, %v972
        %vm983 = vcmp.eq.f32.partialorder %v982, 8.507059e+37
        %v984 = vand.u32 %v972, 2147483648
        %v985 = vor.u32 1.1754944e-38, %v984
        %v986 = vsel %vm983, %v985, %v981
        %v987 = vmul.f32 1.0, %v986
        %v988 = vadd.f32 %v987, 1.0
        %v989 = vadd.f32 %v939, 1.0
        %v990 = vmax.f32 %v794, 0.0
        %v991 = vmax.f32 %v795, 0.0
        %v992 = vld [vmem:[#allocation7] sm:$0xff]
        %v993 = vld [vmem:[#allocation7 + $0x8] sm:$0xff]
        %v994 = vld [vmem:[#allocation7 + $0x10] sm:$0xff]
        %v995 = vld [vmem:[#allocation7 + $0x18] sm:$0xff]
        %v996 = vld [vmem:[%s11] sm:$0x1]
        %v998 = vperm.slane %v996, 0
        %v1001 = vsel %vm814, %v990, 0
        %v1004 = vsel %vm814, %v991, 0
        %1006 = vmatpush.msra.mxu0 0.0
        %1007 = vmatpush.msra.mxu0 0.0
        %1008 = vmatpush.msra.mxu0 0.0
        %1009 = vmatpush.msra.mxu0 0.0
        %1010 = vmatpush.msra.mxu0 0.0
        %1011 = vmatpush.msra.mxu0 0.0
        %1012 = vmatpush.msra.mxu0 0.0
        %1013 = vmatpush.msra.mxu0 0.0
        %1014 = vmatpush.msra.mxu0 0.0
        %1015 = vmatpush.msra.mxu0 0.0
        %1016 = vmatpush.msra.mxu0 0.0
        %1017 = vmatpush.msra.mxu0 0.0
        %1018 = vmatpush.msra.mxu0 %v995
        %1019 = vmatpush.msra.mxu0 %v994
        %1020 = vmatpush.msra.mxu0 %v993
        %1021 = vmatpush.msra.mxu0 %v992
        %1022 = vmatmul.f32.gmra.mxu0 %v1001
        %v1023 = vpop.f32.mrf.mxu0
        %v1024 = vadd.f32 %v998, %v1023
        %1025 = vmatmul.f32.gmra.mxu0 %v1004
        %v1026 = vpop.f32.mrf.mxu0
        %v1027 = vadd.f32 %v998, %v1026
        %1028 = vdwg.mxu0
        %v1029 = vmul.f32 %v1024, %v805
        %v1030 = vmul.f32 %v1027, %v810
        %v1031 = vmax.f32 %v796, 0.0
        %v1032 = vld [vmem:[#allocation8] sm:$0xff]
        %v1033 = vld [vmem:[#allocation8 + $0x8] sm:$0xff]
        %v1034 = vld [vmem:[#allocation8 + $0x10] sm:$0xff]
        %v1035 = vld [vmem:[#allocation8 + $0x18] sm:$0xff]
        %v1036 = vld [vmem:[%s13] sm:$0x1]
        %v1038 = vperm.slane %v1036, 0
        %v1041 = vsel %vm814, %v1031, 0
        %1043 = vmatpush.msra.mxu0 0.0
        %1044 = vmatpush.msra.mxu0 0.0
        %1045 = vmatpush.msra.mxu0 0.0
        %1046 = vmatpush.msra.mxu0 0.0
        %1047 = vmatpush.msra.mxu0 0.0
        %1048 = vmatpush.msra.mxu0 0.0
        %1049 = vmatpush.msra.mxu0 0.0
        %1050 = vmatpush.msra.mxu0 0.0
        %1051 = vmatpush.msra.mxu0 0.0
        %1052 = vmatpush.msra.mxu0 0.0
        %1053 = vmatpush.msra.mxu0 0.0
        %1054 = vmatpush.msra.mxu0 0.0
        %1055 = vmatpush.msra.mxu0 %v1035
        %1056 = vmatpush.msra.mxu0 %v1034
        %1057 = vmatpush.msra.mxu0 %v1033
        %1058 = vmatpush.msra.mxu0 %v1032
        %1059 = vmatmul.f32.gmra.mxu0 %v1041
        %v1060 = vpop.f32.mrf.mxu0
        %v1061 = vadd.f32 %v1038, %v1060
        %1062 = vdwg.mxu0
        %v1063 = vmul.f32 %v1061, %v856
        %v1064 = vperm.slane %v988, 0
        %1067 = vrot.lane.b32.xlu0 %v1029, 96
        %v1068 = vpop.permute.xlu0 %1067
        %1069 = vrot.lane.b32.xlu0 %v1030, 96
        %v1070 = vpop.permute.xlu0 %1069
        %v1073 = vmul.f32 %v1064, %v1068
        %v1074 = vmul.f32 %v1064, %v1070
        %v1075 = vmul.f32 %v1064, %v1029
        %v1076 = vmul.f32 %v1064, %v1030
        %v1077 = vperm.slane %v989, 0
        %1079 = vrot.lane.b32.xlu0 %v1063, 96
        %v1080 = vpop.permute.xlu0 %1079
        %v1082 = vmul.f32 %v1077, %v1080
        %v1083 = vmul.f32 %v1077, %v1063
        %v1084 = vld [vmem:[#allocation10] sm:$0xff]
        %v1085 = vld [vmem:[#allocation10 + $0x8] sm:$0xff]
        %v1086 = vld [vmem:[#allocation10 + $0x10] sm:$0xff]
        %v1087 = vld [vmem:[#allocation10 + $0x18] sm:$0xff]
        %v1088 = vld [vmem:[#allocation11] sm:$0xff]
        %v1089 = vld [vmem:[#allocation11 + $0x8] sm:$0xff]
        %v1090 = vld [vmem:[#allocation11 + $0x10] sm:$0xff]
        %v1091 = vld [vmem:[#allocation11 + $0x18] sm:$0xff]
        %v1092 = vld [vmem:[%s15] sm:$0x1]
        %v1094 = vperm.slane %v1092, 0
        %v1097 = vsel %vm814, %v794, 0
        %v1100 = vsel %vm814, %v795, 0
        %1102 = vmatpush.msra.mxu0 0.0
        %1103 = vmatpush.msra.mxu0 0.0
        %1104 = vmatpush.msra.mxu0 0.0
        %1105 = vmatpush.msra.mxu0 0.0
        %1106 = vmatpush.msra.mxu0 0.0
        %1107 = vmatpush.msra.mxu0 0.0
        %1108 = vmatpush.msra.mxu0 0.0
        %1109 = vmatpush.msra.mxu0 0.0
        %1110 = vmatpush.msra.mxu0 0.0
        %1111 = vmatpush.msra.mxu0 0.0
        %1112 = vmatpush.msra.mxu0 0.0
        %1113 = vmatpush.msra.mxu0 0.0
        %1114 = vmatpush.msra.mxu0 %v1087
        %1115 = vmatpush.msra.mxu0 %v1086
        %1116 = vmatpush.msra.mxu0 %v1085
        %1117 = vmatpush.msra.mxu0 %v1084
        %1118 = vmatmul.f32.gmra.mxu0 %v1097
        %v1119 = vpop.f32.mrf.mxu0
        %v1120 = vadd.f32 %v1094, %v1119
        %1121 = vmatmul.f32.gmra.mxu0 %v1100
        %v1122 = vpop.f32.mrf.mxu0
        %v1123 = vadd.f32 %v1094, %v1122
        %1124 = vdwg.mxu0
        %v1125 = vld [vmem:[%s17] sm:$0x1]
        %v1127 = vperm.slane %v1125, 0
        %v1130 = vsel %vm814, %v796, 0
        %1132 = vmatpush.msra.mxu0 0.0
        %1133 = vmatpush.msra.mxu0 0.0
        %1134 = vmatpush.msra.mxu0 0.0
        %1135 = vmatpush.msra.mxu0 0.0
        %1136 = vmatpush.msra.mxu0 0.0
        %1137 = vmatpush.msra.mxu0 0.0
        %1138 = vmatpush.msra.mxu0 0.0
        %1139 = vmatpush.msra.mxu0 0.0
        %1140 = vmatpush.msra.mxu0 0.0
        %1141 = vmatpush.msra.mxu0 0.0
        %1142 = vmatpush.msra.mxu0 0.0
        %1143 = vmatpush.msra.mxu0 0.0
        %1144 = vmatpush.msra.mxu0 %v1091
        %1145 = vmatpush.msra.mxu0 %v1090
        %1146 = vmatpush.msra.mxu0 %v1089
        %1147 = vmatpush.msra.mxu0 %v1088
        %1148 = vmatmul.f32.gmra.mxu0 %v1130
        %v1149 = vpop.f32.mrf.mxu0
        %v1150 = vadd.f32 %v1127, %v1149
        %1151 = vdwg.mxu0
        %v1153 = vperm.slane %v800, 0
        %vm1155 = vcmask 64512
        %v1157 = vsel %vm1155, %v1073, 0
        %v1160 = vsel %vm1155, %v1074, 0
        %v1163 = vsel %vm1155, %v1075, 0
        %v1166 = vsel %vm1155, %v1076, 0
        %1168 = vmatpush.xpose.msra.mxu0 0.0
        %1169 = vmatpush.xpose.msra.mxu0 0.0
        %1170 = vmatpush.xpose.msra.mxu0 0.0
        %1171 = vmatpush.xpose.msra.mxu0 0.0
        %1172 = vmatpush.xpose.msra.mxu0 0.0
        %1173 = vmatpush.xpose.msra.mxu0 0.0
        %1174 = vmatpush.xpose.msra.mxu0 0.0
        %1175 = vmatpush.xpose.msra.mxu0 0.0
        %1176 = vmatpush.xpose.msra.mxu0 0.0
        %1177 = vmatpush.xpose.msra.mxu0 0.0
        %1178 = vmatpush.xpose.msra.mxu0 0.0
        %1179 = vmatpush.xpose.msra.mxu0 0.0
        %1180 = vmatpush.xpose.msra.mxu0 0.0
        %1181 = vmatpush.xpose.msra.mxu0 0.0
        %1182 = vmatpush.xpose.msra.mxu0 %v1166
        %1183 = vmatpush.xpose.msra.mxu0 %v1163
        %1184 = vmatmul.f32.gmra.mxu0 %v1157
        %v1185 = vpop.f32.mrf.mxu0
        %v1186 = vadd.f32 %v1153, %v1185
        %1187 = vmatmul.f32.gmra.mxu0 %v1160
        %v1188 = vpop.f32.mrf.mxu0
        %v1189 = vadd.f32 %v1153, %v1188
        %1190 = vdwg.mxu0
        %v1191 = vmul.f32 %v1186, 0.35355338
        %v1192 = vmul.f32 %v1189, 0.35355338
        %vm1193 = vcmask 130048
        %v1194 = vsel %vm1193, %v1191, -inf
        %1195 = vmax.xlane.f32.xlu0 %v1194
        %v1196 = vpop.xlane.xlu0 %1195
        %v1197 = vsel %vm1193, %v1192, -inf
        %1198 = vmax.xlane.f32.xlu0 %v1197
        %v1199 = vpop.xlane.xlu0 %1198
        %v1200 = vsub.f32 %v1191, %v1196
        %v1201 = vsub.f32 %v1192, %v1199
        %v1202 = vmul.f32 %v1200, 1.442695
        %v1203 = vpow.pop %v1202
        %v1204 = vmul.f32 %v1201, 1.442695
        %v1205 = vpow.pop %v1204
        %v1206 = vsel %vm1193, %v1203, 0.0
        %1207 = vadd.xlane.f32.xlu0 %v1206
        %v1208 = vpop.xlane.xlu0 %1207
        %v1209 = vsel %vm1193, %v1205, 0.0
        %1210 = vadd.xlane.f32.xlu0 %v1209
        %v1211 = vpop.xlane.xlu0 %1210
        %v1212 = vrcp.pop %v1208
        %v1213 = vmul.f32 %v1208, %v1212
        %v1214 = vsub.f32 1.0, %v1213
        %v1215 = vmul.f32 %v1212, %v1214
        %v1216 = vadd.f32 %v1212, %v1215
        %vm1217 = vweird.f32 %v1208
        %vm1218 = vweird.f32 %v1212
        %vm1219 = vmor %vm1217, %vm1218
        %v1220 = vsel %vm1219, %v1212, %v1216
        %v1221 = vand.u32 2147483647, %v1208
        %vm1222 = vcmp.eq.f32.partialorder %v1221, 8.507059e+37
        %v1223 = vand.u32 %v1208, 2147483648
        %v1224 = vor.u32 1.1754944e-38, %v1223
        %v1225 = vsel %vm1222, %v1224, %v1220
        %v1226 = vrcp.pop %v1211
        %v1227 = vmul.f32 %v1211, %v1226
        %v1228 = vsub.f32 1.0, %v1227
        %v1229 = vmul.f32 %v1226, %v1228
        %v1230 = vadd.f32 %v1226, %v1229
        %vm1231 = vweird.f32 %v1211
        %vm1232 = vweird.f32 %v1226
        %vm1233 = vmor %vm1231, %vm1232
        %v1234 = vsel %vm1233, %v1226, %v1230
        %v1235 = vand.u32 2147483647, %v1211
        %vm1236 = vcmp.eq.f32.partialorder %v1235, 8.507059e+37
        %v1237 = vand.u32 %v1211, 2147483648
        %v1238 = vor.u32 1.1754944e-38, %v1237
        %v1239 = vsel %vm1236, %v1238, %v1234
        %v1240 = vmul.f32 %v1203, %v1225
        %v1241 = vmul.f32 %v1205, %v1239
        %1242 = vrot.lane.b32.xlu0 %v1029, 64
        %v1243 = vpop.permute.xlu0 %1242
        %1244 = vrot.lane.b32.xlu0 %v1030, 64
        %v1245 = vpop.permute.xlu0 %1244
        %v1249 = vsel %vm1193, %v1240, 0
        %v1252 = vsel %vm1193, %v1241, 0
        %1254 = vmatpush.msra.mxu0 0.0
        %1255 = vmatpush.msra.mxu0 0.0
        %1256 = vmatpush.msra.mxu0 0.0
        %1257 = vmatpush.msra.mxu0 0.0
        %1258 = vmatpush.msra.mxu0 0.0
        %1259 = vmatpush.msra.mxu0 0.0
        %1260 = vmatpush.msra.mxu0 0.0
        %1261 = vmatpush.msra.mxu0 0.0
        %1262 = vmatpush.msra.mxu0 0.0
        %1263 = vmatpush.msra.mxu0 0.0
        %1264 = vmatpush.msra.mxu0 0.0
        %1265 = vmatpush.msra.mxu0 0.0
        %1266 = vmatpush.msra.mxu0 0.0
        %1267 = vmatpush.msra.mxu0 0.0
        %1268 = vmatpush.msra.mxu0 %v1245
        %1269 = vmatpush.msra.mxu0 %v1243
        %1270 = vmatmul.f32.gmra.mxu0 %v1249
        %v1271 = vpop.f32.mrf.mxu0
        %v1272 = vadd.f32 0.0, %v1271
        %1273 = vmatmul.f32.gmra.mxu0 %v1252
        %v1274 = vpop.f32.mrf.mxu0
        %v1275 = vadd.f32 0.0, %v1274
        %1276 = vdwg.mxu0
        %v1278 = vperm.slane %v801, 0
        %v1281 = vsel %vm1155, %v1082, 0
        %v1284 = vsel %vm1155, %v1083, 0
        %1286 = vmatpush.xpose.msra.mxu0 0.0
        %1287 = vmatpush.xpose.msra.mxu0 0.0
        %1288 = vmatpush.xpose.msra.mxu0 0.0
        %1289 = vmatpush.xpose.msra.mxu0 0.0
        %1290 = vmatpush.xpose.msra.mxu0 0.0
        %1291 = vmatpush.xpose.msra.mxu0 0.0
        %1292 = vmatpush.xpose.msra.mxu0 0.0
        %1293 = vmatpush.xpose.msra.mxu0 0.0
        %1294 = vmatpush.xpose.msra.mxu0 0.0
        %1295 = vmatpush.xpose.msra.mxu0 0.0
        %1296 = vmatpush.xpose.msra.mxu0 0.0
        %1297 = vmatpush.xpose.msra.mxu0 0.0
        %1298 = vmatpush.xpose.msra.mxu0 0.0
        %1299 = vmatpush.xpose.msra.mxu0 0.0
        %1300 = vmatpush.xpose.msra.mxu0 0.0
        %1301 = vmatpush.xpose.msra.mxu0 %v1284
        %1302 = vmatmul.f32.gmra.mxu0 %v1281
        %v1303 = vpop.f32.mrf.mxu0
        %v1304 = vadd.f32 %v1278, %v1303
        %1305 = vdwg.mxu0
        %v1306 = vmul.f32 %v1304, 0.35355338
        %v1307 = vsel %vm1155, %v1306, -inf
        %1308 = vmax.xlane.f32.xlu0 %v1307
        %v1309 = vpop.xlane.xlu0 %1308
        %v1310 = vsub.f32 %v1306, %v1309
        %v1311 = vmul.f32 %v1310, 1.442695
        %v1312 = vpow.pop %v1311
        %v1313 = vsel %vm1155, %v1312, 0.0
        %1314 = vadd.xlane.f32.xlu0 %v1313
        %v1315 = vpop.xlane.xlu0 %1314
        %v1316 = vrcp.pop %v1315
        %v1317 = vmul.f32 %v1315, %v1316
        %v1318 = vsub.f32 1.0, %v1317
        %v1319 = vmul.f32 %v1316, %v1318
        %v1320 = vadd.f32 %v1316, %v1319
        %vm1321 = vweird.f32 %v1315
        %vm1322 = vweird.f32 %v1316
        %vm1323 = vmor %vm1321, %vm1322
        %v1324 = vsel %vm1323, %v1316, %v1320
        %v1325 = vand.u32 2147483647, %v1315
        %vm1326 = vcmp.eq.f32.partialorder %v1325, 8.507059e+37
        %v1327 = vand.u32 %v1315, 2147483648
        %v1328 = vor.u32 1.1754944e-38, %v1327
        %v1329 = vsel %vm1326, %v1328, %v1324
        %v1330 = vmul.f32 %v1312, %v1329
        %1331 = vrot.lane.b32.xlu0 %v1063, 64
        %v1332 = vpop.permute.xlu0 %1331
        %v1335 = vsel %vm1155, %v1330, 0
        %1337 = vmatpush.msra.mxu0 0.0
        %1338 = vmatpush.msra.mxu0 0.0
        %1339 = vmatpush.msra.mxu0 0.0
        %1340 = vmatpush.msra.mxu0 0.0
        %1341 = vmatpush.msra.mxu0 0.0
        %1342 = vmatpush.msra.mxu0 0.0
        %1343 = vmatpush.msra.mxu0 0.0
        %1344 = vmatpush.msra.mxu0 0.0
        %1345 = vmatpush.msra.mxu0 0.0
        %1346 = vmatpush.msra.mxu0 0.0
        %1347 = vmatpush.msra.mxu0 0.0
        %1348 = vmatpush.msra.mxu0 0.0
        %1349 = vmatpush.msra.mxu0 0.0
        %1350 = vmatpush.msra.mxu0 0.0
        %1351 = vmatpush.msra.mxu0 0.0
        %1352 = vmatpush.msra.mxu0 %v1332
        %1353 = vmatmul.f32.gmra.mxu0 %v1335
        %v1354 = vpop.f32.mrf.mxu0
        %v1355 = vadd.f32 0.0, %v1354
        %1356 = vdwg.mxu0
        %v1358 = vsel %vm1155, %v1272, 0
        %v1361 = vsel %vm1155, %v1275, 0
        %1363 = vmatpush.msra.mxu0 0.0
        %1364 = vmatpush.msra.mxu0 0.0
        %1365 = vmatpush.msra.mxu0 0.0
        %1366 = vmatpush.msra.mxu0 0.0
        %1367 = vmatpush.msra.mxu0 0.0
        %1368 = vmatpush.msra.mxu0 0.0
        %1369 = vmatpush.msra.mxu0 0.0
        %1370 = vmatpush.msra.mxu0 0.0
        %1371 = vmatpush.msra.mxu0 0.0
        %1372 = vmatpush.msra.mxu0 0.0
        %1373 = vmatpush.msra.mxu0 0.0
        %1374 = vmatpush.msra.mxu0 0.0
        %1375 = vmatpush.msra.mxu0 0.0
        %1376 = vmatpush.msra.mxu0 0.0
        %1377 = vmatpush.msra.mxu0 0.0
        %1378 = vmatpush.msra.mxu0 %v1084
        %1379 = vmatmul.f32.gmra.mxu0 %v1358
        %v1380 = vpop.f32.mrf.mxu0
        %v1381 = vadd.f32 0.0, %v1380
        %1382 = vmatmul.f32.gmra.mxu0 %v1361
        %v1383 = vpop.f32.mrf.mxu0
        %v1384 = vadd.f32 0.0, %v1383
        %1385 = vdwg.mxu0
        %v1386 = vadd.f32 %v1120, %v1381
        %v1387 = vadd.f32 %v1123, %v1384
        %v1389 = vsel %vm1155, %v1355, 0
        %1391 = vmatpush.msra.mxu0 0.0
        %1392 = vmatpush.msra.mxu0 0.0
        %1393 = vmatpush.msra.mxu0 0.0
        %1394 = vmatpush.msra.mxu0 0.0
        %1395 = vmatpush.msra.mxu0 0.0
        %1396 = vmatpush.msra.mxu0 0.0
        %1397 = vmatpush.msra.mxu0 0.0
        %1398 = vmatpush.msra.mxu0 0.0
        %1399 = vmatpush.msra.mxu0 0.0
        %1400 = vmatpush.msra.mxu0 0.0
        %1401 = vmatpush.msra.mxu0 0.0
        %1402 = vmatpush.msra.mxu0 0.0
        %1403 = vmatpush.msra.mxu0 0.0
        %1404 = vmatpush.msra.mxu0 0.0
        %1405 = vmatpush.msra.mxu0 0.0
        %1406 = vmatpush.msra.mxu0 %v1088
        %1407 = vmatmul.f32.gmra.mxu0 %v1389
        %v1408 = vpop.f32.mrf.mxu0
        %v1409 = vadd.f32 0.0, %v1408
        %1410 = vdwg.mxu0
        %v1411 = vadd.f32 %v1150, %v1409
        %1412 = vrot.lane.b32.xlu0 %v1073, 120
        %v1413 = vpop.permute.xlu0 %1412
        %1414 = vrot.lane.b32.xlu0 %v1074, 120
        %v1415 = vpop.permute.xlu0 %1414
        %1416 = vrot.lane.b32.xlu0 %v1075, 120
        %v1417 = vpop.permute.xlu0 %1416
        %1418 = vrot.lane.b32.xlu0 %v1076, 120
        %v1419 = vpop.permute.xlu0 %1418
        %v1420 = vsel %vm1155, %v1413, 0
        %v1422 = vsel %vm1155, %v1415, 0
        %v1424 = vsel %vm1155, %v1417, 0
        %v1426 = vsel %vm1155, %v1419, 0
        %1428 = vmatpush.xpose.msra.mxu0 0.0
        %1429 = vmatpush.xpose.msra.mxu0 0.0
        %1430 = vmatpush.xpose.msra.mxu0 0.0
        %1431 = vmatpush.xpose.msra.mxu0 0.0
        %1432 = vmatpush.xpose.msra.mxu0 0.0
        %1433 = vmatpush.xpose.msra.mxu0 0.0
        %1434 = vmatpush.xpose.msra.mxu0 0.0
        %1435 = vmatpush.xpose.msra.mxu0 0.0
        %1436 = vmatpush.xpose.msra.mxu0 0.0
        %1437 = vmatpush.xpose.msra.mxu0 0.0
        %1438 = vmatpush.xpose.msra.mxu0 0.0
        %1439 = vmatpush.xpose.msra.mxu0 0.0
        %1440 = vmatpush.xpose.msra.mxu0 0.0
        %1441 = vmatpush.xpose.msra.mxu0 0.0
        %1442 = vmatpush.xpose.msra.mxu0 %v1426
        %1443 = vmatpush.xpose.msra.mxu0 %v1424
        %1444 = vmatmul.f32.gmra.mxu0 %v1420
        %v1445 = vpop.f32.mrf.mxu0
        %v1446 = vadd.f32 %v1153, %v1445
        %1447 = vmatmul.f32.gmra.mxu0 %v1422
        %v1448 = vpop.f32.mrf.mxu0
        %v1449 = vadd.f32 %v1153, %v1448
        %1450 = vdwg.mxu0
        %v1451 = vmul.f32 %v1446, 0.35355338
        %v1452 = vmul.f32 %v1449, 0.35355338
        %v1453 = vsel %vm1193, %v1451, -inf
        %1454 = vmax.xlane.f32.xlu0 %v1453
        %v1455 = vpop.xlane.xlu0 %1454
        %v1456 = vsel %vm1193, %v1452, -inf
        %1457 = vmax.xlane.f32.xlu0 %v1456
        %v1458 = vpop.xlane.xlu0 %1457
        %v1459 = vsub.f32 %v1451, %v1455
        %v1460 = vsub.f32 %v1452, %v1458
        %v1461 = vmul.f32 %v1459, 1.442695
        %v1462 = vpow.pop %v1461
        %v1463 = vmul.f32 %v1460, 1.442695
        %v1464 = vpow.pop %v1463
        %v1465 = vsel %vm1193, %v1462, 0.0
        %1466 = vadd.xlane.f32.xlu0 %v1465
        %v1467 = vpop.xlane.xlu0 %1466
        %v1468 = vsel %vm1193, %v1464, 0.0
        %1469 = vadd.xlane.f32.xlu0 %v1468
        %v1470 = vpop.xlane.xlu0 %1469
        %v1471 = vrcp.pop %v1467
        %v1472 = vmul.f32 %v1467, %v1471
        %v1473 = vsub.f32 1.0, %v1472
        %v1474 = vmul.f32 %v1471, %v1473
        %v1475 = vadd.f32 %v1471, %v1474
        %vm1476 = vweird.f32 %v1467
        %vm1477 = vweird.f32 %v1471
        %vm1478 = vmor %vm1476, %vm1477
        %v1479 = vsel %vm1478, %v1471, %v1475
        %v1480 = vand.u32 2147483647, %v1467
        %vm1481 = vcmp.eq.f32.partialorder %v1480, 8.507059e+37
        %v1482 = vand.u32 %v1467, 2147483648
        %v1483 = vor.u32 1.1754944e-38, %v1482
        %v1484 = vsel %vm1481, %v1483, %v1479
        %v1485 = vrcp.pop %v1470
        %v1486 = vmul.f32 %v1470, %v1485
        %v1487 = vsub.f32 1.0, %v1486
        %v1488 = vmul.f32 %v1485, %v1487
        %v1489 = vadd.f32 %v1485, %v1488
        %vm1490 = vweird.f32 %v1470
        %vm1491 = vweird.f32 %v1485
        %vm1492 = vmor %vm1490, %vm1491
        %v1493 = vsel %vm1492, %v1485, %v1489
        %v1494 = vand.u32 2147483647, %v1470
        %vm1495 = vcmp.eq.f32.partialorder %v1494, 8.507059e+37
        %v1496 = vand.u32 %v1470, 2147483648
        %v1497 = vor.u32 1.1754944e-38, %v1496
        %v1498 = vsel %vm1495, %v1497, %v1493
        %v1499 = vmul.f32 %v1462, %v1484
        %v1500 = vmul.f32 %v1464, %v1498
        %1501 = vrot.lane.b32.xlu0 %v1029, 56
        %v1502 = vpop.permute.xlu0 %1501
        %1503 = vrot.lane.b32.xlu0 %v1030, 56
        %v1504 = vpop.permute.xlu0 %1503
        %v1508 = vsel %vm1193, %v1499, 0
        %v1511 = vsel %vm1193, %v1500, 0
        %1513 = vmatpush.msra.mxu0 0.0
        %1514 = vmatpush.msra.mxu0 0.0
        %1515 = vmatpush.msra.mxu0 0.0
        %1516 = vmatpush.msra.mxu0 0.0
        %1517 = vmatpush.msra.mxu0 0.0
        %1518 = vmatpush.msra.mxu0 0.0
        %1519 = vmatpush.msra.mxu0 0.0
        %1520 = vmatpush.msra.mxu0 0.0
        %1521 = vmatpush.msra.mxu0 0.0
        %1522 = vmatpush.msra.mxu0 0.0
        %1523 = vmatpush.msra.mxu0 0.0
        %1524 = vmatpush.msra.mxu0 0.0
        %1525 = vmatpush.msra.mxu0 0.0
        %1526 = vmatpush.msra.mxu0 0.0
        %1527 = vmatpush.msra.mxu0 %v1504
        %1528 = vmatpush.msra.mxu0 %v1502
        %1529 = vmatmul.f32.gmra.mxu0 %v1508
        %v1530 = vpop.f32.mrf.mxu0
        %v1531 = vadd.f32 0.0, %v1530
        %1532 = vmatmul.f32.gmra.mxu0 %v1511
        %v1533 = vpop.f32.mrf.mxu0
        %v1534 = vadd.f32 0.0, %v1533
        %1535 = vdwg.mxu0
        %1536 = vrot.lane.b32.xlu0 %v1082, 120
        %v1537 = vpop.permute.xlu0 %1536
        %1538 = vrot.lane.b32.xlu0 %v1083, 120
        %v1539 = vpop.permute.xlu0 %1538
        %v1540 = vsel %vm1155, %v1537, 0
        %v1542 = vsel %vm1155, %v1539, 0
        %1544 = vmatpush.xpose.msra.mxu0 0.0
        %1545 = vmatpush.xpose.msra.mxu0 0.0
        %1546 = vmatpush.xpose.msra.mxu0 0.0
        %1547 = vmatpush.xpose.msra.mxu0 0.0
        %1548 = vmatpush.xpose.msra.mxu0 0.0
        %1549 = vmatpush.xpose.msra.mxu0 0.0
        %1550 = vmatpush.xpose.msra.mxu0 0.0
        %1551 = vmatpush.xpose.msra.mxu0 0.0
        %1552 = vmatpush.xpose.msra.mxu0 0.0
        %1553 = vmatpush.xpose.msra.mxu0 0.0
        %1554 = vmatpush.xpose.msra.mxu0 0.0
        %1555 = vmatpush.xpose.msra.mxu0 0.0
        %1556 = vmatpush.xpose.msra.mxu0 0.0
        %1557 = vmatpush.xpose.msra.mxu0 0.0
        %1558 = vmatpush.xpose.msra.mxu0 0.0
        %1559 = vmatpush.xpose.msra.mxu0 %v1542
        %1560 = vmatmul.f32.gmra.mxu0 %v1540
        %v1561 = vpop.f32.mrf.mxu0
        %v1562 = vadd.f32 %v1278, %v1561
        %1563 = vdwg.mxu0
        %v1564 = vmul.f32 %v1562, 0.35355338
        %v1565 = vsel %vm1155, %v1564, -inf
        %1566 = vmax.xlane.f32.xlu0 %v1565
        %v1567 = vpop.xlane.xlu0 %1566
        %v1568 = vsub.f32 %v1564, %v1567
        %v1569 = vmul.f32 %v1568, 1.442695
        %v1570 = vpow.pop %v1569
        %v1571 = vsel %vm1155, %v1570, 0.0
        %1572 = vadd.xlane.f32.xlu0 %v1571
        %v1573 = vpop.xlane.xlu0 %1572
        %v1574 = vrcp.pop %v1573
        %v1575 = vmul.f32 %v1573, %v1574
        %v1576 = vsub.f32 1.0, %v1575
        %v1577 = vmul.f32 %v1574, %v1576
        %v1578 = vadd.f32 %v1574, %v1577
        %vm1579 = vweird.f32 %v1573
        %vm1580 = vweird.f32 %v1574
        %vm1581 = vmor %vm1579, %vm1580
        %v1582 = vsel %vm1581, %v1574, %v1578
        %v1583 = vand.u32 2147483647, %v1573
        %vm1584 = vcmp.eq.f32.partialorder %v1583, 8.507059e+37
        %v1585 = vand.u32 %v1573, 2147483648
        %v1586 = vor.u32 1.1754944e-38, %v1585
        %v1587 = vsel %vm1584, %v1586, %v1582
        %v1588 = vmul.f32 %v1570, %v1587
        %1589 = vrot.lane.b32.xlu0 %v1063, 56
        %v1590 = vpop.permute.xlu0 %1589
        %v1593 = vsel %vm1155, %v1588, 0
        %1595 = vmatpush.msra.mxu0 0.0
        %1596 = vmatpush.msra.mxu0 0.0
        %1597 = vmatpush.msra.mxu0 0.0
        %1598 = vmatpush.msra.mxu0 0.0
        %1599 = vmatpush.msra.mxu0 0.0
        %1600 = vmatpush.msra.mxu0 0.0
        %1601 = vmatpush.msra.mxu0 0.0
        %1602 = vmatpush.msra.mxu0 0.0
        %1603 = vmatpush.msra.mxu0 0.0
        %1604 = vmatpush.msra.mxu0 0.0
        %1605 = vmatpush.msra.mxu0 0.0
        %1606 = vmatpush.msra.mxu0 0.0
        %1607 = vmatpush.msra.mxu0 0.0
        %1608 = vmatpush.msra.mxu0 0.0
        %1609 = vmatpush.msra.mxu0 0.0
        %1610 = vmatpush.msra.mxu0 %v1590
        %1611 = vmatmul.f32.gmra.mxu0 %v1593
        %v1612 = vpop.f32.mrf.mxu0
        %v1613 = vadd.f32 0.0, %v1612
        %1614 = vdwg.mxu0
        %v1616 = vsel %vm1155, %v1531, 0
        %v1619 = vsel %vm1155, %v1534, 0
        %1621 = vmatpush.msra.mxu0 0.0
        %1622 = vmatpush.msra.mxu0 0.0
        %1623 = vmatpush.msra.mxu0 0.0
        %1624 = vmatpush.msra.mxu0 0.0
        %1625 = vmatpush.msra.mxu0 0.0
        %1626 = vmatpush.msra.mxu0 0.0
        %1627 = vmatpush.msra.mxu0 0.0
        %1628 = vmatpush.msra.mxu0 0.0
        %1629 = vmatpush.msra.mxu0 0.0
        %1630 = vmatpush.msra.mxu0 0.0
        %1631 = vmatpush.msra.mxu0 0.0
        %1632 = vmatpush.msra.mxu0 0.0
        %1633 = vmatpush.msra.mxu0 0.0
        %1634 = vmatpush.msra.mxu0 0.0
        %1635 = vmatpush.msra.mxu0 0.0
        %1636 = vmatpush.msra.mxu0 %v1085
        %1637 = vmatmul.f32.gmra.mxu0 %v1616
        %v1638 = vpop.f32.mrf.mxu0
        %v1639 = vadd.f32 0.0, %v1638
        %1640 = vmatmul.f32.gmra.mxu0 %v1619
        %v1641 = vpop.f32.mrf.mxu0
        %v1642 = vadd.f32 0.0, %v1641
        %1643 = vdwg.mxu0
        %v1644 = vadd.f32 %v1386, %v1639
        %v1645 = vadd.f32 %v1387, %v1642
        %v1647 = vsel %vm1155, %v1613, 0
        %1649 = vmatpush.msra.mxu0 0.0
        %1650 = vmatpush.msra.mxu0 0.0
        %1651 = vmatpush.msra.mxu0 0.0
        %1652 = vmatpush.msra.mxu0 0.0
        %1653 = vmatpush.msra.mxu0 0.0
        %1654 = vmatpush.msra.mxu0 0.0
        %1655 = vmatpush.msra.mxu0 0.0
        %1656 = vmatpush.msra.mxu0 0.0
        %1657 = vmatpush.msra.mxu0 0.0
        %1658 = vmatpush.msra.mxu0 0.0
        %1659 = vmatpush.msra.mxu0 0.0
        %1660 = vmatpush.msra.mxu0 0.0
        %1661 = vmatpush.msra.mxu0 0.0
        %1662 = vmatpush.msra.mxu0 0.0
        %1663 = vmatpush.msra.mxu0 0.0
        %1664 = vmatpush.msra.mxu0 %v1089
        %1665 = vmatmul.f32.gmra.mxu0 %v1647
        %v1666 = vpop.f32.mrf.mxu0
        %v1667 = vadd.f32 0.0, %v1666
        %1668 = vdwg.mxu0
        %v1669 = vadd.f32 %v1411, %v1667
        %1670 = vrot.lane.b32.xlu0 %v1073, 112
        %v1671 = vpop.permute.xlu0 %1670
        %1672 = vrot.lane.b32.xlu0 %v1074, 112
        %v1673 = vpop.permute.xlu0 %1672
        %1674 = vrot.lane.b32.xlu0 %v1075, 112
        %v1675 = vpop.permute.xlu0 %1674
        %1676 = vrot.lane.b32.xlu0 %v1076, 112
        %v1677 = vpop.permute.xlu0 %1676
        %v1678 = vsel %vm1155, %v1671, 0
        %v1680 = vsel %vm1155, %v1673, 0
        %v1682 = vsel %vm1155, %v1675, 0
        %v1684 = vsel %vm1155, %v1677, 0
        %1686 = vmatpush.xpose.msra.mxu0 0.0
        %1687 = vmatpush.xpose.msra.mxu0 0.0
        %1688 = vmatpush.xpose.msra.mxu0 0.0
        %1689 = vmatpush.xpose.msra.mxu0 0.0
        %1690 = vmatpush.xpose.msra.mxu0 0.0
        %1691 = vmatpush.xpose.msra.mxu0 0.0
        %1692 = vmatpush.xpose.msra.mxu0 0.0
        %1693 = vmatpush.xpose.msra.mxu0 0.0
        %1694 = vmatpush.xpose.msra.mxu0 0.0
        %1695 = vmatpush.xpose.msra.mxu0 0.0
        %1696 = vmatpush.xpose.msra.mxu0 0.0
        %1697 = vmatpush.xpose.msra.mxu0 0.0
        %1698 = vmatpush.xpose.msra.mxu0 0.0
        %1699 = vmatpush.xpose.msra.mxu0 0.0
        %1700 = vmatpush.xpose.msra.mxu0 %v1684
        %1701 = vmatpush.xpose.msra.mxu0 %v1682
        %1702 = vmatmul.f32.gmra.mxu0 %v1678
        %v1703 = vpop.f32.mrf.mxu0
        %v1704 = vadd.f32 %v1153, %v1703
        %1705 = vmatmul.f32.gmra.mxu0 %v1680
        %v1706 = vpop.f32.mrf.mxu0
        %v1707 = vadd.f32 %v1153, %v1706
        %1708 = vdwg.mxu0
        %v1709 = vmul.f32 %v1704, 0.35355338
        %v1710 = vmul.f32 %v1707, 0.35355338
        %v1711 = vsel %vm1193, %v1709, -inf
        %1712 = vmax.xlane.f32.xlu0 %v1711
        %v1713 = vpop.xlane.xlu0 %1712
        %v1714 = vsel %vm1193, %v1710, -inf
        %1715 = vmax.xlane.f32.xlu0 %v1714
        %v1716 = vpop.xlane.xlu0 %1715
        %v1717 = vsub.f32 %v1709, %v1713
        %v1718 = vsub.f32 %v1710, %v1716
        %v1719 = vmul.f32 %v1717, 1.442695
        %v1720 = vpow.pop %v1719
        %v1721 = vmul.f32 %v1718, 1.442695
        %v1722 = vpow.pop %v1721
        %v1723 = vsel %vm1193, %v1720, 0.0
        %1724 = vadd.xlane.f32.xlu0 %v1723
        %v1725 = vpop.xlane.xlu0 %1724
        %v1726 = vsel %vm1193, %v1722, 0.0
        %1727 = vadd.xlane.f32.xlu0 %v1726
        %v1728 = vpop.xlane.xlu0 %1727
        %v1729 = vrcp.pop %v1725
        %v1730 = vmul.f32 %v1725, %v1729
        %v1731 = vsub.f32 1.0, %v1730
        %v1732 = vmul.f32 %v1729, %v1731
        %v1733 = vadd.f32 %v1729, %v1732
        %vm1734 = vweird.f32 %v1725
        %vm1735 = vweird.f32 %v1729
        %vm1736 = vmor %vm1734, %vm1735
        %v1737 = vsel %vm1736, %v1729, %v1733
        %v1738 = vand.u32 2147483647, %v1725
        %vm1739 = vcmp.eq.f32.partialorder %v1738, 8.507059e+37
        %v1740 = vand.u32 %v1725, 2147483648
        %v1741 = vor.u32 1.1754944e-38, %v1740
        %v1742 = vsel %vm1739, %v1741, %v1737
        %v1743 = vrcp.pop %v1728
        %v1744 = vmul.f32 %v1728, %v1743
        %v1745 = vsub.f32 1.0, %v1744
        %v1746 = vmul.f32 %v1743, %v1745
        %v1747 = vadd.f32 %v1743, %v1746
        %vm1748 = vweird.f32 %v1728
        %vm1749 = vweird.f32 %v1743
        %vm1750 = vmor %vm1748, %vm1749
        %v1751 = vsel %vm1750, %v1743, %v1747
        %v1752 = vand.u32 2147483647, %v1728
        %vm1753 = vcmp.eq.f32.partialorder %v1752, 8.507059e+37
        %v1754 = vand.u32 %v1728, 2147483648
        %v1755 = vor.u32 1.1754944e-38, %v1754
        %v1756 = vsel %vm1753, %v1755, %v1751
        %v1757 = vmul.f32 %v1720, %v1742
        %v1758 = vmul.f32 %v1722, %v1756
        %1759 = vrot.lane.b32.xlu0 %v1029, 48
        %v1760 = vpop.permute.xlu0 %1759
        %1761 = vrot.lane.b32.xlu0 %v1030, 48
        %v1762 = vpop.permute.xlu0 %1761
        %v1766 = vsel %vm1193, %v1757, 0
        %v1769 = vsel %vm1193, %v1758, 0
        %1771 = vmatpush.msra.mxu0 0.0
        %1772 = vmatpush.msra.mxu0 0.0
        %1773 = vmatpush.msra.mxu0 0.0
        %1774 = vmatpush.msra.mxu0 0.0
        %1775 = vmatpush.msra.mxu0 0.0
        %1776 = vmatpush.msra.mxu0 0.0
        %1777 = vmatpush.msra.mxu0 0.0
        %1778 = vmatpush.msra.mxu0 0.0
        %1779 = vmatpush.msra.mxu0 0.0
        %1780 = vmatpush.msra.mxu0 0.0
        %1781 = vmatpush.msra.mxu0 0.0
        %1782 = vmatpush.msra.mxu0 0.0
        %1783 = vmatpush.msra.mxu0 0.0
        %1784 = vmatpush.msra.mxu0 0.0
        %1785 = vmatpush.msra.mxu0 %v1762
        %1786 = vmatpush.msra.mxu0 %v1760
        %1787 = vmatmul.f32.gmra.mxu0 %v1766
        %v1788 = vpop.f32.mrf.mxu0
        %v1789 = vadd.f32 0.0, %v1788
        %1790 = vmatmul.f32.gmra.mxu0 %v1769
        %v1791 = vpop.f32.mrf.mxu0
        %v1792 = vadd.f32 0.0, %v1791
        %1793 = vdwg.mxu0
        %1794 = vrot.lane.b32.xlu0 %v1082, 112
        %v1795 = vpop.permute.xlu0 %1794
        %1796 = vrot.lane.b32.xlu0 %v1083, 112
        %v1797 = vpop.permute.xlu0 %1796
        %v1798 = vsel %vm1155, %v1795, 0
        %v1800 = vsel %vm1155, %v1797, 0
        %1802 = vmatpush.xpose.msra.mxu0 0.0
        %1803 = vmatpush.xpose.msra.mxu0 0.0
        %1804 = vmatpush.xpose.msra.mxu0 0.0
        %1805 = vmatpush.xpose.msra.mxu0 0.0
        %1806 = vmatpush.xpose.msra.mxu0 0.0
        %1807 = vmatpush.xpose.msra.mxu0 0.0
        %1808 = vmatpush.xpose.msra.mxu0 0.0
        %1809 = vmatpush.xpose.msra.mxu0 0.0
        %1810 = vmatpush.xpose.msra.mxu0 0.0
        %1811 = vmatpush.xpose.msra.mxu0 0.0
        %1812 = vmatpush.xpose.msra.mxu0 0.0
        %1813 = vmatpush.xpose.msra.mxu0 0.0
        %1814 = vmatpush.xpose.msra.mxu0 0.0
        %1815 = vmatpush.xpose.msra.mxu0 0.0
        %1816 = vmatpush.xpose.msra.mxu0 0.0
        %1817 = vmatpush.xpose.msra.mxu0 %v1800
        %1818 = vmatmul.f32.gmra.mxu0 %v1798
        %v1819 = vpop.f32.mrf.mxu0
        %v1820 = vadd.f32 %v1278, %v1819
        %1821 = vdwg.mxu0
        %v1822 = vmul.f32 %v1820, 0.35355338
        %v1823 = vsel %vm1155, %v1822, -inf
        %1824 = vmax.xlane.f32.xlu0 %v1823
        %v1825 = vpop.xlane.xlu0 %1824
        %v1826 = vsub.f32 %v1822, %v1825
        %v1827 = vmul.f32 %v1826, 1.442695
        %v1828 = vpow.pop %v1827
        %v1829 = vsel %vm1155, %v1828, 0.0
        %1830 = vadd.xlane.f32.xlu0 %v1829
        %v1831 = vpop.xlane.xlu0 %1830
        %v1832 = vrcp.pop %v1831
        %v1833 = vmul.f32 %v1831, %v1832
        %v1834 = vsub.f32 1.0, %v1833
        %v1835 = vmul.f32 %v1832, %v1834
        %v1836 = vadd.f32 %v1832, %v1835
        %vm1837 = vweird.f32 %v1831
        %vm1838 = vweird.f32 %v1832
        %vm1839 = vmor %vm1837, %vm1838
        %v1840 = vsel %vm1839, %v1832, %v1836
        %v1841 = vand.u32 2147483647, %v1831
        %vm1842 = vcmp.eq.f32.partialorder %v1841, 8.507059e+37
        %v1843 = vand.u32 %v1831, 2147483648
        %v1844 = vor.u32 1.1754944e-38, %v1843
        %v1845 = vsel %vm1842, %v1844, %v1840
        %v1846 = vmul.f32 %v1828, %v1845
        %1847 = vrot.lane.b32.xlu0 %v1063, 48
        %v1848 = vpop.permute.xlu0 %1847
        %v1851 = vsel %vm1155, %v1846, 0
        %1853 = vmatpush.msra.mxu0 0.0
        %1854 = vmatpush.msra.mxu0 0.0
        %1855 = vmatpush.msra.mxu0 0.0
        %1856 = vmatpush.msra.mxu0 0.0
        %1857 = vmatpush.msra.mxu0 0.0
        %1858 = vmatpush.msra.mxu0 0.0
        %1859 = vmatpush.msra.mxu0 0.0
        %1860 = vmatpush.msra.mxu0 0.0
        %1861 = vmatpush.msra.mxu0 0.0
        %1862 = vmatpush.msra.mxu0 0.0
        %1863 = vmatpush.msra.mxu0 0.0
        %1864 = vmatpush.msra.mxu0 0.0
        %1865 = vmatpush.msra.mxu0 0.0
        %1866 = vmatpush.msra.mxu0 0.0
        %1867 = vmatpush.msra.mxu0 0.0
        %1868 = vmatpush.msra.mxu0 %v1848
        %1869 = vmatmul.f32.gmra.mxu0 %v1851
        %v1870 = vpop.f32.mrf.mxu0
        %v1871 = vadd.f32 0.0, %v1870
        %1872 = vdwg.mxu0
        %v1874 = vsel %vm1155, %v1789, 0
        %v1877 = vsel %vm1155, %v1792, 0
        %1879 = vmatpush.msra.mxu0 0.0
        %1880 = vmatpush.msra.mxu0 0.0
        %1881 = vmatpush.msra.mxu0 0.0
        %1882 = vmatpush.msra.mxu0 0.0
        %1883 = vmatpush.msra.mxu0 0.0
        %1884 = vmatpush.msra.mxu0 0.0
        %1885 = vmatpush.msra.mxu0 0.0
        %1886 = vmatpush.msra.mxu0 0.0
        %1887 = vmatpush.msra.mxu0 0.0
        %1888 = vmatpush.msra.mxu0 0.0
        %1889 = vmatpush.msra.mxu0 0.0
        %1890 = vmatpush.msra.mxu0 0.0
        %1891 = vmatpush.msra.mxu0 0.0
        %1892 = vmatpush.msra.mxu0 0.0
        %1893 = vmatpush.msra.mxu0 0.0
        %1894 = vmatpush.msra.mxu0 %v1086
        %1895 = vmatmul.f32.gmra.mxu0 %v1874
        %v1896 = vpop.f32.mrf.mxu0
        %v1897 = vadd.f32 0.0, %v1896
        %1898 = vmatmul.f32.gmra.mxu0 %v1877
        %v1899 = vpop.f32.mrf.mxu0
        %v1900 = vadd.f32 0.0, %v1899
        %1901 = vdwg.mxu0
        %v1902 = vadd.f32 %v1644, %v1897
        %v1903 = vadd.f32 %v1645, %v1900
        %v1905 = vsel %vm1155, %v1871, 0
        %1907 = vmatpush.msra.mxu0 0.0
        %1908 = vmatpush.msra.mxu0 0.0
        %1909 = vmatpush.msra.mxu0 0.0
        %1910 = vmatpush.msra.mxu0 0.0
        %1911 = vmatpush.msra.mxu0 0.0
        %1912 = vmatpush.msra.mxu0 0.0
        %1913 = vmatpush.msra.mxu0 0.0
        %1914 = vmatpush.msra.mxu0 0.0
        %1915 = vmatpush.msra.mxu0 0.0
        %1916 = vmatpush.msra.mxu0 0.0
        %1917 = vmatpush.msra.mxu0 0.0
        %1918 = vmatpush.msra.mxu0 0.0
        %1919 = vmatpush.msra.mxu0 0.0
        %1920 = vmatpush.msra.mxu0 0.0
        %1921 = vmatpush.msra.mxu0 0.0
        %1922 = vmatpush.msra.mxu0 %v1090
        %1923 = vmatmul.f32.gmra.mxu0 %v1905
        %v1924 = vpop.f32.mrf.mxu0
        %v1925 = vadd.f32 0.0, %v1924
        %1926 = vdwg.mxu0
        %v1927 = vadd.f32 %v1669, %v1925
        %1928 = vrot.lane.b32.xlu0 %v1073, 104
        %v1929 = vpop.permute.xlu0 %1928
        %1930 = vrot.lane.b32.xlu0 %v1074, 104
        %v1931 = vpop.permute.xlu0 %1930
        %1932 = vrot.lane.b32.xlu0 %v1075, 104
        %v1933 = vpop.permute.xlu0 %1932
        %1934 = vrot.lane.b32.xlu0 %v1076, 104
        %v1935 = vpop.permute.xlu0 %1934
        %v1936 = vsel %vm1155, %v1929, 0
        %v1938 = vsel %vm1155, %v1931, 0
        %v1940 = vsel %vm1155, %v1933, 0
        %v1942 = vsel %vm1155, %v1935, 0
        %1944 = vmatpush.xpose.msra.mxu0 0.0
        %1945 = vmatpush.xpose.msra.mxu0 0.0
        %1946 = vmatpush.xpose.msra.mxu0 0.0
        %1947 = vmatpush.xpose.msra.mxu0 0.0
        %1948 = vmatpush.xpose.msra.mxu0 0.0
        %1949 = vmatpush.xpose.msra.mxu0 0.0
        %1950 = vmatpush.xpose.msra.mxu0 0.0
        %1951 = vmatpush.xpose.msra.mxu0 0.0
        %1952 = vmatpush.xpose.msra.mxu0 0.0
        %1953 = vmatpush.xpose.msra.mxu0 0.0
        %1954 = vmatpush.xpose.msra.mxu0 0.0
        %1955 = vmatpush.xpose.msra.mxu0 0.0
        %1956 = vmatpush.xpose.msra.mxu0 0.0
        %1957 = vmatpush.xpose.msra.mxu0 0.0
        %1958 = vmatpush.xpose.msra.mxu0 %v1942
        %1959 = vmatpush.xpose.msra.mxu0 %v1940
        %1960 = vmatmul.f32.gmra.mxu0 %v1936
        %v1961 = vpop.f32.mrf.mxu0
        %v1962 = vadd.f32 %v1153, %v1961
        %1963 = vmatmul.f32.gmra.mxu0 %v1938
        %v1964 = vpop.f32.mrf.mxu0
        %v1965 = vadd.f32 %v1153, %v1964
        %1966 = vdwg.mxu0
        %v1967 = vmul.f32 %v1962, 0.35355338
        %v1968 = vmul.f32 %v1965, 0.35355338
        %v1969 = vsel %vm1193, %v1967, -inf
        %1970 = vmax.xlane.f32.xlu0 %v1969
        %v1971 = vpop.xlane.xlu0 %1970
        %v1972 = vsel %vm1193, %v1968, -inf
        %1973 = vmax.xlane.f32.xlu0 %v1972
        %v1974 = vpop.xlane.xlu0 %1973
        %v1975 = vsub.f32 %v1967, %v1971
        %v1976 = vsub.f32 %v1968, %v1974
        %v1977 = vmul.f32 %v1975, 1.442695
        %v1978 = vpow.pop %v1977
        %v1979 = vmul.f32 %v1976, 1.442695
        %v1980 = vpow.pop %v1979
        %v1981 = vsel %vm1193, %v1978, 0.0
        %1982 = vadd.xlane.f32.xlu0 %v1981
        %v1983 = vpop.xlane.xlu0 %1982
        %v1984 = vsel %vm1193, %v1980, 0.0
        %1985 = vadd.xlane.f32.xlu0 %v1984
        %v1986 = vpop.xlane.xlu0 %1985
        %v1987 = vrcp.pop %v1983
        %v1988 = vmul.f32 %v1983, %v1987
        %v1989 = vsub.f32 1.0, %v1988
        %v1990 = vmul.f32 %v1987, %v1989
        %v1991 = vadd.f32 %v1987, %v1990
        %vm1992 = vweird.f32 %v1983
        %vm1993 = vweird.f32 %v1987
        %vm1994 = vmor %vm1992, %vm1993
        %v1995 = vsel %vm1994, %v1987, %v1991
        %v1996 = vand.u32 2147483647, %v1983
        %vm1997 = vcmp.eq.f32.partialorder %v1996, 8.507059e+37
        %v1998 = vand.u32 %v1983, 2147483648
        %v1999 = vor.u32 1.1754944e-38, %v1998
        %v2000 = vsel %vm1997, %v1999, %v1995
        %v2001 = vrcp.pop %v1986
        %v2002 = vmul.f32 %v1986, %v2001
        %v2003 = vsub.f32 1.0, %v2002
        %v2004 = vmul.f32 %v2001, %v2003
        %v2005 = vadd.f32 %v2001, %v2004
        %vm2006 = vweird.f32 %v1986
        %vm2007 = vweird.f32 %v2001
        %vm2008 = vmor %vm2006, %vm2007
        %v2009 = vsel %vm2008, %v2001, %v2005
        %v2010 = vand.u32 2147483647, %v1986
        %vm2011 = vcmp.eq.f32.partialorder %v2010, 8.507059e+37
        %v2012 = vand.u32 %v1986, 2147483648
        %v2013 = vor.u32 1.1754944e-38, %v2012
        %v2014 = vsel %vm2011, %v2013, %v2009
        %v2015 = vmul.f32 %v1978, %v2000
        %v2016 = vmul.f32 %v1980, %v2014
        %2017 = vrot.lane.b32.xlu0 %v1029, 40
        %v2018 = vpop.permute.xlu0 %2017
        %2019 = vrot.lane.b32.xlu0 %v1030, 40
        %v2020 = vpop.permute.xlu0 %2019
        %v2024 = vsel %vm1193, %v2015, 0
        %v2027 = vsel %vm1193, %v2016, 0
        %2029 = vmatpush.msra.mxu0 0.0
        %2030 = vmatpush.msra.mxu0 0.0
        %2031 = vmatpush.msra.mxu0 0.0
        %2032 = vmatpush.msra.mxu0 0.0
        %2033 = vmatpush.msra.mxu0 0.0
        %2034 = vmatpush.msra.mxu0 0.0
        %2035 = vmatpush.msra.mxu0 0.0
        %2036 = vmatpush.msra.mxu0 0.0
        %2037 = vmatpush.msra.mxu0 0.0
        %2038 = vmatpush.msra.mxu0 0.0
        %2039 = vmatpush.msra.mxu0 0.0
        %2040 = vmatpush.msra.mxu0 0.0
        %2041 = vmatpush.msra.mxu0 0.0
        %2042 = vmatpush.msra.mxu0 0.0
        %2043 = vmatpush.msra.mxu0 %v2020
        %2044 = vmatpush.msra.mxu0 %v2018
        %2045 = vmatmul.f32.gmra.mxu0 %v2024
        %v2046 = vpop.f32.mrf.mxu0
        %v2047 = vadd.f32 0.0, %v2046
        %2048 = vmatmul.f32.gmra.mxu0 %v2027
        %v2049 = vpop.f32.mrf.mxu0
        %v2050 = vadd.f32 0.0, %v2049
        %2051 = vdwg.mxu0
        %2052 = vrot.lane.b32.xlu0 %v1082, 104
        %v2053 = vpop.permute.xlu0 %2052
        %2054 = vrot.lane.b32.xlu0 %v1083, 104
        %v2055 = vpop.permute.xlu0 %2054
        %v2056 = vsel %vm1155, %v2053, 0
        %v2058 = vsel %vm1155, %v2055, 0
        %2060 = vmatpush.xpose.msra.mxu0 0.0
        %2061 = vmatpush.xpose.msra.mxu0 0.0
        %2062 = vmatpush.xpose.msra.mxu0 0.0
        %2063 = vmatpush.xpose.msra.mxu0 0.0
        %2064 = vmatpush.xpose.msra.mxu0 0.0
        %2065 = vmatpush.xpose.msra.mxu0 0.0
        %2066 = vmatpush.xpose.msra.mxu0 0.0
        %2067 = vmatpush.xpose.msra.mxu0 0.0
        %2068 = vmatpush.xpose.msra.mxu0 0.0
        %2069 = vmatpush.xpose.msra.mxu0 0.0
        %2070 = vmatpush.xpose.msra.mxu0 0.0
        %2071 = vmatpush.xpose.msra.mxu0 0.0
        %2072 = vmatpush.xpose.msra.mxu0 0.0
        %2073 = vmatpush.xpose.msra.mxu0 0.0
        %2074 = vmatpush.xpose.msra.mxu0 0.0
        %2075 = vmatpush.xpose.msra.mxu0 %v2058
        %2076 = vmatmul.f32.gmra.mxu0 %v2056
        %v2077 = vpop.f32.mrf.mxu0
        %v2078 = vadd.f32 %v1278, %v2077
        %2079 = vdwg.mxu0
        %v2080 = vmul.f32 %v2078, 0.35355338
        %v2081 = vsel %vm1155, %v2080, -inf
        %2082 = vmax.xlane.f32.xlu0 %v2081
        %v2083 = vpop.xlane.xlu0 %2082
        %v2084 = vsub.f32 %v2080, %v2083
        %v2085 = vmul.f32 %v2084, 1.442695
        %v2086 = vpow.pop %v2085
        %v2087 = vsel %vm1155, %v2086, 0.0
        %2088 = vadd.xlane.f32.xlu0 %v2087
        %v2089 = vpop.xlane.xlu0 %2088
        %v2090 = vrcp.pop %v2089
        %v2091 = vmul.f32 %v2089, %v2090
        %v2092 = vsub.f32 1.0, %v2091
        %v2093 = vmul.f32 %v2090, %v2092
        %v2094 = vadd.f32 %v2090, %v2093
        %vm2095 = vweird.f32 %v2089
        %vm2096 = vweird.f32 %v2090
        %vm2097 = vmor %vm2095, %vm2096
        %v2098 = vsel %vm2097, %v2090, %v2094
        %v2099 = vand.u32 2147483647, %v2089
        %vm2100 = vcmp.eq.f32.partialorder %v2099, 8.507059e+37
        %v2101 = vand.u32 %v2089, 2147483648
        %v2102 = vor.u32 1.1754944e-38, %v2101
        %v2103 = vsel %vm2100, %v2102, %v2098
        %v2104 = vmul.f32 %v2086, %v2103
        %2105 = vrot.lane.b32.xlu0 %v1063, 40
        %v2106 = vpop.permute.xlu0 %2105
        %v2109 = vsel %vm1155, %v2104, 0
        %2111 = vmatpush.msra.mxu0 0.0
        %2112 = vmatpush.msra.mxu0 0.0
        %2113 = vmatpush.msra.mxu0 0.0
        %2114 = vmatpush.msra.mxu0 0.0
        %2115 = vmatpush.msra.mxu0 0.0
        %2116 = vmatpush.msra.mxu0 0.0
        %2117 = vmatpush.msra.mxu0 0.0
        %2118 = vmatpush.msra.mxu0 0.0
        %2119 = vmatpush.msra.mxu0 0.0
        %2120 = vmatpush.msra.mxu0 0.0
        %2121 = vmatpush.msra.mxu0 0.0
        %2122 = vmatpush.msra.mxu0 0.0
        %2123 = vmatpush.msra.mxu0 0.0
        %2124 = vmatpush.msra.mxu0 0.0
        %2125 = vmatpush.msra.mxu0 0.0
        %2126 = vmatpush.msra.mxu0 %v2106
        %2127 = vmatmul.f32.gmra.mxu0 %v2109
        %v2128 = vpop.f32.mrf.mxu0
        %v2129 = vadd.f32 0.0, %v2128
        %2130 = vdwg.mxu0
        %v2132 = vsel %vm1155, %v2047, 0
        %v2135 = vsel %vm1155, %v2050, 0
        %2137 = vmatpush.msra.mxu0 0.0
        %2138 = vmatpush.msra.mxu0 0.0
        %2139 = vmatpush.msra.mxu0 0.0
        %2140 = vmatpush.msra.mxu0 0.0
        %2141 = vmatpush.msra.mxu0 0.0
        %2142 = vmatpush.msra.mxu0 0.0
        %2143 = vmatpush.msra.mxu0 0.0
        %2144 = vmatpush.msra.mxu0 0.0
        %2145 = vmatpush.msra.mxu0 0.0
        %2146 = vmatpush.msra.mxu0 0.0
        %2147 = vmatpush.msra.mxu0 0.0
        %2148 = vmatpush.msra.mxu0 0.0
        %2149 = vmatpush.msra.mxu0 0.0
        %2150 = vmatpush.msra.mxu0 0.0
        %2151 = vmatpush.msra.mxu0 0.0
        %2152 = vmatpush.msra.mxu0 %v1087
        %2153 = vmatmul.f32.gmra.mxu0 %v2132
        %v2154 = vpop.f32.mrf.mxu0
        %v2155 = vadd.f32 0.0, %v2154
        %2156 = vmatmul.f32.gmra.mxu0 %v2135
        %v2157 = vpop.f32.mrf.mxu0
        %v2158 = vadd.f32 0.0, %v2157
        %2159 = vdwg.mxu0
        %v2160 = vadd.f32 %v1902, %v2155
        %v2161 = vadd.f32 %v1903, %v2158
        %v2163 = vsel %vm1155, %v2129, 0
        %2165 = vmatpush.msra.mxu0 0.0
        %2166 = vmatpush.msra.mxu0 0.0
        %2167 = vmatpush.msra.mxu0 0.0
        %2168 = vmatpush.msra.mxu0 0.0
        %2169 = vmatpush.msra.mxu0 0.0
        %2170 = vmatpush.msra.mxu0 0.0
        %2171 = vmatpush.msra.mxu0 0.0
        %2172 = vmatpush.msra.mxu0 0.0
        %2173 = vmatpush.msra.mxu0 0.0
        %2174 = vmatpush.msra.mxu0 0.0
        %2175 = vmatpush.msra.mxu0 0.0
        %2176 = vmatpush.msra.mxu0 0.0
        %2177 = vmatpush.msra.mxu0 0.0
        %2178 = vmatpush.msra.mxu0 0.0
        %2179 = vmatpush.msra.mxu0 0.0
        %2180 = vmatpush.msra.mxu0 %v1091
        %2181 = vmatmul.f32.gmra.mxu0 %v2163
        %v2182 = vpop.f32.mrf.mxu0
        %v2183 = vadd.f32 0.0, %v2182
        %2184 = vdwg.mxu0
        %v2185 = vadd.f32 %v1927, %v2183
        %2186 = vst.msk [vmem:[%s762] sm:$0xff] %vm814, %v2160
        %2187 = vst.msk [vmem:[%s762 + $0x8] sm:$0xff] %vm814, %v2161
        %2188 = vst.msk [vmem:[%s769] sm:$0xff] %vm814, %v2185
        %s2189 = sand.u32 %s457, 1
        %s2190 = scalar_lea.sflag [#allocation4], %s2189
        %s2191 = sand.u32 %s457, 1
        %s2192 = smul.addr %s2191, 16
        %s2193 = scalar_lea.vmem [#allocation13], %s2192
        %s2194 = sand.u32 %s483, 1
        %s2195 = scalar_lea.sflag [#allocation15], %s2194
        %s2196 = sand.u32 %s483, 1
        %s2197 = smul.addr %s2196, 8
        %s2198 = scalar_lea.vmem [#allocation14], %s2197
        // Predicated region
        $region117: #{tpu_custom_call.1} parent=91 // pred_check
          %p2199 = pneg %p467
        $region118: #{tpu_custom_call.1} parent=91 // pred_check_branch
          %2201 = sbr.rel (%p2199) target = $region120
        $region119: #{tpu_custom_call.1} parent=91 // pred_region
          %2203 = vsyncadd %s2190, 0
          %s2204 = smul.addr %s41, 2
          %s2205 = smul.addr %s2204, 8
          %s2206 = scalar_lea.hbm %s18, %s2205
          %s2207 = sshll.u32 %s2193, 4
          %s2208 = int_to_ptr.vmem [resolvable:$true] %s2207
          %s2209 = sshll.u32 %s2206, 4
          %s2210 = int_to_ptr.hbm [resolvable:$true] %s2209
          %2215 = dma.vmem_to_hbm [thread:$0]  %s2208, 256, %s2210, %s2190, 128, 128, 8
        $region120: #{tpu_custom_call.1} parent=91 // pred_fallthru
          _
        // Predicated region
        $region121: #{tpu_custom_call.1} parent=91 // pred_check
          %p2216 = pneg %p493
        $region122: #{tpu_custom_call.1} parent=91 // pred_check_branch
          %2218 = sbr.rel (%p2216) target = $region124
        $region123: #{tpu_custom_call.1} parent=91 // pred_region
          %2220 = vsyncadd %s2195, 0
          %s2221 = smul.addr %s41, 8
          %s2222 = scalar_lea.hbm %s19, %s2221
          %s2224 = sshll.u32 %s2198, 4
          %s2225 = int_to_ptr.vmem [resolvable:$true] %s2224
          %s2226 = sshll.u32 %s2222, 4
          %s2227 = int_to_ptr.hbm [resolvable:$true] %s2226
          %2229 = dma.vmem_to_hbm [thread:$0]  %s2225, 128, %s2227, %s2195
        $region124: #{tpu_custom_call.1} parent=91 // pred_fallthru
          _
      $region92: #{tpu_custom_call.1} parent=5 // pred_fallthru
        _
      %p2230 = scmp.le.s32.totalorder 2, %s36
      // Predicated region
      $region125: #{tpu_custom_call.1} parent=5 // pred_check
        %p2231 = pneg %p2230
      $region126: #{tpu_custom_call.1} parent=5 // pred_check_branch
        %2233 = sbr.rel (%p2231) target = $region128
      $region127: #{tpu_custom_call.1} parent=5 // pred_region
        %s2234 = ssub.s32 %s36, 2
        // Predicated region
        $region129: #{tpu_custom_call.1} parent=127 // pred_check
          %p2235 = pneg %p473
        $region130: #{tpu_custom_call.1} parent=127 // pred_check_branch
          %2237 = sbr.rel (%p2235) target = $region132
        $region131: #{tpu_custom_call.1} parent=127 // pred_region
          %s2238 = sand.u32 %s458, 1
          %s2239 = scalar_lea.sflag [#allocation4], %s2238
          %s2240 = sand.u32 %s458, 1
          %s2241 = smul.addr %s2240, 16
          %s2242 = scalar_lea.vmem [#allocation13], %s2241
          %2244 = dma.done %s2239, 256
        $region132: #{tpu_custom_call.1} parent=127 // pred_fallthru
          _
        // Predicated region
        $region133: #{tpu_custom_call.1} parent=127 // pred_check
          %p2245 = pneg %p499
        $region134: #{tpu_custom_call.1} parent=127 // pred_check_branch
          %2247 = sbr.rel (%p2245) target = $region136
        $region135: #{tpu_custom_call.1} parent=127 // pred_region
          %s2248 = sand.u32 %s484, 1
          %s2249 = scalar_lea.sflag [#allocation15], %s2248
          %s2250 = sand.u32 %s484, 1
          %s2251 = smul.addr %s2250, 8
          %s2252 = scalar_lea.vmem [#allocation14], %s2251
          %2254 = dma.done %s2249, 128
        $region136: #{tpu_custom_call.1} parent=127 // pred_fallthru
          _
      $region128: #{tpu_custom_call.1} parent=5 // pred_fallthru
        _
    $region6: #{tpu_custom_call.1} parent=1 // loop_footer
      %s40 = sadd.s32 1, %s36
    $region7: #{tpu_custom_call.1} parent=1 // loop_footer_branch
      %35 = sbr.rel target = $region3
    $region8: #{tpu_custom_call.1} parent=1 // loop_exit
      _
    %2255 = vsyncpa [#allocation3], 1
    %s2256 = scalar_lea.sflag [#allocation3], 1
    %2257 = vsyncpa %s2256, 1
    %2258 = vsyncpa [#allocation6], 1
    %2259 = vsyncpa [#allocation9], 1
    %2260 = vsyncpa [#allocation12], 1
    %2261 = vsyncpa [#allocation4], 1
    %s2262 = scalar_lea.sflag [#allocation4], 1
    %2263 = vsyncpa %s2262, 1
    %2264 = vsyncpa [#allocation15], 1
    %s2265 = scalar_lea.sflag [#allocation15], 1
    %2266 = vsyncpa %s2265, 1

</llo_original>
